<compile_context>
chip_gen: v6e
topology: v6e:2x2x1
jax: 0.10.0
libtpu: 0.0.40
codegen_flags: <defaults>
</compile_context>

<pallas_src>
import functools

import jax
import jax.numpy as jnp
from jax.experimental import pallas as pl
from jax.experimental.pallas import tpu as pltpu


def _round_up(v, m):
    return -(-v // m) * m


@functools.lru_cache(maxsize=1)
def _vmem_capacity_bytes():
    try:
        info = pltpu.get_tpu_info()
        for attr in ("vmem_capacity_bytes", "vmem_bytes", "vmem_size_bytes"):
            v = getattr(info, attr, None)
            if v:
                return int(v)
    except Exception:
        pass
    # Conservative fallback (v7x-sized) if the query is unavailable.
    return 64 * 1024 * 1024


def _vmem_limit_bytes():
    # Leave headroom for compiler scratch / semaphores: 3/4 of physical VMEM,
    # capped at 96 MiB (v5e/v6e have 128 MiB; v7x has 64 MiB -> 48 MiB).
    return int(min(96 * 1024 * 1024, _vmem_capacity_bytes() * 3 // 4))


def _pick_hw_tile(hw_pad, bytes_per_col, vmem_budget, max_tile=8192):
    """Largest lane-dense (multiple-of-128) divisor of hw_pad fitting budget."""
    cap = max(128, min(max_tile, vmem_budget // max(1, bytes_per_col)))
    cap = (cap // 128) * 128
    best = 128
    t = 128
    limit = min(cap, hw_pad)
    while t <= limit:
        if hw_pad % t == 0:
            best = t
        t += 128
    return min(best, hw_pad)


# -----------------------------------------------------------------------------
# Kernel 1: fused 1x1 convs (conv_1/conv_2/conv_3) with MXU channel-mean rows.
#   x:     [B, C_in, HWp]            (read once)
#   w_all: [3*cp + 8, C_in], b_all: [3*cp + 8, 1]
#     rows: [0:cp) conv_1 | [cp:2cp) conv_2 | [2cp:3cp) conv_3
#           | [3cp:3cp+2) channel-mean rows of conv_1 / conv_3 | zero pad
# outputs: edge_n [B, cp, HWp] (bf16), edge_c_last / edge_r_last [cp, HWp]
#          (bf16, only batch B-1 is stored), means [B, 2, HWp] (f32).
# -----------------------------------------------------------------------------
def _fused_conv_kernel(x_ref, w_ref, b_ref,
                       en_ref, ec_last_ref, er_last_ref, mean_ref,
                       *, cp, b_last):
    y = jnp.dot(w_ref[...], x_ref[...],
                preferred_element_type=jnp.float32) + b_ref[...]
    en_ref[...] = y[cp:2 * cp].astype(en_ref.dtype)
    mean_ref[...] = y[3 * cp:3 * cp + 2].astype(mean_ref.dtype)

    # Only batch b_last's conv_1/conv_3 slabs are consumed downstream; skip
    # the HBM writeback for every other batch (b axis is innermost/arbitrary).
    @pl.when(pl.program_id(1) == b_last)
    def _():
        ec_last_ref[...] = y[:cp].astype(ec_last_ref.dtype)
        er_last_ref[...] = y[2 * cp:3 * cp].astype(er_last_ref.dtype)


def fused_convs(x_flat, w_all, b_all, cp, hw_tile, vmem_limit):
    B, c_in, hw_pad = x_flat.shape
    m_rows = w_all.shape[0]
    n_t = hw_pad // hw_tile
    kernel = functools.partial(_fused_conv_kernel, cp=cp, b_last=B - 1)
    return pl.pallas_call(
        kernel,
        out_shape=(
            jax.ShapeDtypeStruct((B, cp, hw_pad), jnp.bfloat16),   # edge_n
            jax.ShapeDtypeStruct((cp, hw_pad), jnp.bfloat16),      # edge_c[b_last]
            jax.ShapeDtypeStruct((cp, hw_pad), jnp.bfloat16),      # edge_r[b_last]
            jax.ShapeDtypeStruct((B, 2, hw_pad), jnp.float32),     # channel means
        ),
        grid=(n_t, B),                      # b innermost -> one flush per tile
        in_specs=[
            pl.BlockSpec((None, c_in, hw_tile), lambda t, b: (b, 0, t)),
            pl.BlockSpec((m_rows, c_in), lambda t, b: (0, 0)),
            pl.BlockSpec((m_rows, 1), lambda t, b: (0, 0)),
        ],
        out_specs=(
            pl.BlockSpec((None, cp, hw_tile), lambda t, b: (b, 0, t)),
            pl.BlockSpec((cp, hw_tile), lambda t, b: (0, t)),
            pl.BlockSpec((cp, hw_tile), lambda t, b: (0, t)),
            pl.BlockSpec((None, 2, hw_tile), lambda t, b: (b, 0, t)),
        ),
        compiler_params=pltpu.CompilerParams(
            dimension_semantics=("parallel", "arbitrary"),
            vmem_limit_bytes=vmem_limit),
    )(x_flat, w_all, b_all)


# -----------------------------------------------------------------------------
# Kernel 2: covariance + channel-softmax + gating + conv_out, tiled over HW.
# Reproduces (per output batch b2, b_last = B-1 left over from PyTorch loops):
#   diff[c]  = edge[c, b_last] - f_aver[b2]
#   cov[c]   = transpose_hw(diff[c]) * diff[c] / c_half
#   softmax over the channel dim (legacy nn.Softmax() -> dim=1 on 4D)
#   out[b2]  = conv_out(edge_n[b2] * softmax_c * softmax_r)
# transpose_hw(diff) = edge_T - mean_T (transpose commutes with subtract), so
# the transposed operands are tiny wrapper-side slabs; everything in-kernel is
# elementwise along HW plus a channel reduction -> HW tiling is exact.
# -----------------------------------------------------------------------------
def _eda_attn_out_kernel(ec_ref, ecT_ref, er_ref, erT_ref,
                         en_ref, mean_ref, meanT_ref, w_out_ref, b_out_ref,
                         o_ref, *, inv_c, c_half, cp):
    means = mean_ref[...].astype(jnp.float32)     # [2, T]
    meansT = meanT_ref[...].astype(jnp.float32)   # [2, T] (H<->W transposed)

    if cp > c_half:   # channel padding present -> mask it out of the softmax
        valid = jax.lax.broadcasted_iota(jnp.int32, (cp, 1), 0) < c_half
    else:
        valid = None

    def chan_softmax(e_ref, eT_ref, row):
        diff = e_ref[...].astype(jnp.float32) - means[row:row + 1, :]
        diff_t = eT_ref[...].astype(jnp.float32) - meansT[row:row + 1, :]
        cov = diff_t * diff * jnp.float32(inv_c)
        if valid is not None:
            cov = jnp.where(valid, cov, -jnp.inf)
        m = jnp.max(cov, axis=0, keepdims=True)
        e = jnp.exp(cov - m)
        if valid is not None:
            e = jnp.where(valid, e, 0.0)
        s = jnp.sum(e, axis=0, keepdims=True)
        return e * pl.reciprocal(s, approx=True)   # softmax over channels

    sm_c = chan_softmax(ec_ref, ecT_ref, 0)
    sm_r = chan_softmax(er_ref, erT_ref, 1)
    gated = en_ref[...].astype(jnp.float32) * sm_c * sm_r        # [cp, T]
    out = jnp.dot(w_out_ref[...], gated,
                  preferred_element_type=jnp.float32) + b_out_ref[...]
    o_ref[...] = out.astype(o_ref.dtype)


def eda_attention_out(ec_last, ecT_last, er_last, erT_last, edge_n,
                      means, meansT, w_out_p, b_out,
                      c_half, hw_tile, vmem_limit):
    B, cp, hw_pad = edge_n.shape
    c_out = w_out_p.shape[0]
    n_t = hw_pad // hw_tile
    kernel = functools.partial(_eda_attn_out_kernel,
                               inv_c=1.0 / c_half, c_half=c_half, cp=cp)
    return pl.pallas_call(
        kernel,
        out_shape=jax.ShapeDtypeStruct((B, c_out, hw_pad), jnp.float32),
        grid=(n_t, B),   # b innermost: b_last slabs / w_out fetched once per tile
        in_specs=[
            pl.BlockSpec((cp, hw_tile), lambda t, b: (0, t)),           # ec_last
            pl.BlockSpec((cp, hw_tile), lambda t, b: (0, t)),           # ecT_last
            pl.BlockSpec((cp, hw_tile), lambda t, b: (0, t)),           # er_last
            pl.BlockSpec((cp, hw_tile), lambda t, b: (0, t)),           # erT_last
            pl.BlockSpec((None, cp, hw_tile), lambda t, b: (b, 0, t)),  # edge_n[b]
            pl.BlockSpec((None, 2, hw_tile), lambda t, b: (b, 0, t)),   # means[b]
            pl.BlockSpec((None, 2, hw_tile), lambda t, b: (b, 0, t)),   # meansT[b]
            pl.BlockSpec((c_out, cp), lambda t, b: (0, 0)),             # w_out
            pl.BlockSpec((c_out, 1), lambda t, b: (0, 0)),              # b_out
        ],
        out_specs=pl.BlockSpec((None, c_out, hw_tile), lambda t, b: (b, 0, t)),
        compiler_params=pltpu.CompilerParams(
            dimension_semantics=("parallel", "parallel"),
            vmem_limit_bytes=vmem_limit),
    )(ec_last, ecT_last, er_last, erT_last, edge_n, means, meansT,
      w_out_p, b_out)


# -----------------------------------------------------------------------------
# EDA forward (glue in plain JAX, compute in the two Pallas kernels above).
# -----------------------------------------------------------------------------
@jax.jit
def eda_forward(x, params):
    B, c_in, H, W = x.shape
    assert H == W, "EDA's transpose(1,2)*elementwise requires square spatial dims"
    c_half = c_in // 2
    cp = max(8, _round_up(c_half, 8))        # sublane-aligned channel group
    hw = H * W
    hw_pad = _round_up(hw, 128)              # lane-dense spatial axis

    # --- pack weights: conv_1 | conv_2 | conv_3 | MXU channel-mean rows ------
    def pad_group(w, b):
        pad = cp - c_half
        return jnp.pad(w, ((0, pad), (0, 0))), jnp.pad(b, ((0, pad), (0, 0)))

    w1p, b1p = pad_group(params["w1"], params["b1"])
    w2p, b2p = pad_group(params["w2"], params["b2"])
    w3p, b3p = pad_group(params["w3"], params["b3"])
    mean_w = jnp.stack([jnp.sum(params["w1"], axis=0),
                        jnp.sum(params["w3"], axis=0)]) / c_half     # [2, c_in]
    mean_b = jnp.stack([jnp.sum(params["b1"], axis=0),
                        jnp.sum(params["b3"], axis=0)]) / c_half     # [2, 1]
    mean_w = jnp.pad(mean_w, ((0, 6), (0, 0)))                       # [8, c_in]
    mean_b = jnp.pad(mean_b, ((0, 6), (0, 0)))                       # [8, 1]
    w_all = jnp.concatenate([w1p, w2p, w3p, mean_w], axis=0)         # [3cp+8, c_in]
    b_all = jnp.concatenate([b1p, b2p, b3p, mean_b], axis=0)         # [3cp+8, 1]
    w_out_p = jnp.pad(params["w_out"], ((0, 0), (0, cp - c_half)))   # [c_in, cp]
    m_rows = 3 * cp + 8

    # --- lane-pad the input spatial axis -------------------------------------
    x_flat = x.reshape(B, c_in, hw)
    if hw_pad != hw:
        x_flat = jnp.pad(x_flat, ((0, 0), (0, 0), (0, hw_pad - hw)))

    # --- tile size from a per-generation VMEM budget -------------------------
    vmem_limit = _vmem_limit_bytes()
    bytes_col_k1 = 2 * (4 * c_in + 3 * 2 * cp + 2 * 4) + 4 * m_rows
    bytes_col_k2 = 2 * (5 * 2 * cp + 2 * 2 * 4 + 4 * c_in) + 6 * 4 * cp
    bytes_per_col = max(bytes_col_k1, bytes_col_k2)
    hw_tile = _pick_hw_tile(hw_pad, bytes_per_col, vmem_limit // 2)

    # --- Kernel 1: fused 1x1 convs + channel means (reads x exactly once) ----
    edge_n, ec_last, er_last, means = fused_convs(
        x_flat, w_all, b_all, cp, hw_tile, vmem_limit)

    # TODO(synk): cv2.Canny stage (host-side OpenCV uint8 edge detection) has
    # no Pallas/JAX equivalent; conv outputs are passed through unchanged.

    # --- tiny wrapper-side H<->W transposes (layout plumbing only) -----------
    def t_flat(a):
        real = a[..., :hw]
        lead = real.shape[:-1]
        t = jnp.swapaxes(real.reshape(lead + (H, W)), -1, -2).reshape(lead + (hw,))
        if hw_pad != hw:
            t = jnp.pad(t, [(0, 0)] * (t.ndim - 1) + [(0, hw_pad - hw)])
        return t

    ecT_last = t_flat(ec_last)
    erT_last = t_flat(er_last)
    meansT = t_flat(means)

    # --- Kernel 2: covariance + softmax + gating + conv_out ------------------
    out = eda_attention_out(ec_last, ecT_last, er_last, erT_last, edge_n,
                            means, meansT, w_out_p, params["b_out"],
                            c_half, hw_tile, vmem_limit)
    return out[..., :hw].reshape(B, c_in, H, W)


def init_params(key, in_planes):
    """Deterministic Conv2d-style init (kaiming-uniform-like bounds)."""
    c_half = in_planes // 2

    def conv_init(k, c_out, c_in):
        k1, k2 = jax.random.split(k)
        bound = 1.0 / (c_in ** 0.5)
        w = jax.random.uniform(k1, (c_out, c_in), jnp.float32, -bound, bound)
        b = jax.random.uniform(k2, (c_out, 1), jnp.float32, -bound, bound)
        return w, b

    k1, k2, k3, k4 = jax.random.split(key, 4)
    w1, b1 = conv_init(k1, c_half, in_planes)
    w2, b2 = conv_init(k2, c_half, in_planes)
    w3, b3 = conv_init(k3, c_half, in_planes)
    wo, bo = conv_init(k4, in_planes, c_half)
    return dict(w1=w1, b1=b1, w2=w2, b2=b2, w3=w3, b3=b3, w_out=wo, b_out=bo)


if __name__ == "__main__":
    B, C_IN, H, W = 2, 4, 16, 16
    x = jax.random.normal(jax.random.PRNGKey(0), (B, C_IN, H, W), jnp.float32)
    params = init_params(jax.random.PRNGKey(1), C_IN)

    out = eda_forward(x, params)
    jax.block_until_ready(out)

    assert out.shape == (B, C_IN, H, W), out.shape
    assert out.dtype == jnp.float32
    assert bool(jnp.all(jnp.isfinite(out)))
    print("KERNEL_OK")
</pallas_src>

<mosaic_0001>
module attributes {stable_mosaic.version = 11 : i64} {
  func.func @_fused_conv_kernel(%arg0: i32, %arg1: i32, %arg2: memref<1x4x256xf32, #tpu.memory_space<vmem>>, %arg3: memref<32x4xf32, #tpu.memory_space<vmem>>, %arg4: memref<32x1xf32, #tpu.memory_space<vmem>>, %arg5: memref<1x8x256xbf16, #tpu.memory_space<vmem>>, %arg6: memref<8x256xbf16, #tpu.memory_space<vmem>>, %arg7: memref<8x256xbf16, #tpu.memory_space<vmem>>, %arg8: memref<1x2x256xf32, #tpu.memory_space<vmem>>) attributes {dimension_semantics = [#tpu.dimension_semantics<parallel>, #tpu.dimension_semantics<arbitrary>], iteration_bounds = array<i64: 1, 2>, scalar_prefetch = 0 : i64, scratch_operands = 0 : i64, tpu.core_type = #tpu.core_type<tc>, window_params = [{transform_indices = @transform_0, window_bounds = array<i64: 1, 4, 256>}, {pipeline_mode = #tpu.pipeline_mode<synchronous>, transform_indices = @transform_1, window_bounds = array<i64: 32, 4>}, {pipeline_mode = #tpu.pipeline_mode<synchronous>, transform_indices = @transform_2, window_bounds = array<i64: 32, 1>}, {transform_indices = @transform_3, window_bounds = array<i64: 1, 8, 256>}, {transform_indices = @transform_4, window_bounds = array<i64: 8, 256>}, {transform_indices = @transform_5, window_bounds = array<i64: 8, 256>}, {transform_indices = @transform_6, window_bounds = array<i64: 1, 2, 256>}]} {
    %c0 = arith.constant 0 : index
    %c0_0 = arith.constant 0 : index
    %0 = vector.load %arg3[%c0, %c0_0] : memref<32x4xf32, #tpu.memory_space<vmem>>, vector<32x4xf32>
    %c0_1 = arith.constant 0 : index
    %c0_2 = arith.constant 0 : index
    %c0_3 = arith.constant 0 : index
    %1 = vector.load %arg2[%c0_1, %c0_2, %c0_3] : memref<1x4x256xf32, #tpu.memory_space<vmem>>, vector<1x4x256xf32>
    %2 = vector.shape_cast %1 : vector<1x4x256xf32> to vector<4x256xf32>
    %cst = arith.constant dense<0.000000e+00> : vector<32x256xf32>
    %3 = tpu.matmul %0, %2, %cst {dimension_numbers = #tpu.dot_dimension_numbers<[1], [0], [0], [1], [0, 0, 1, 1], [], []>} : vector<32x4xf32>, vector<4x256xf32>, vector<32x256xf32> -> vector<32x256xf32>
    %c0_4 = arith.constant 0 : index
    %c0_5 = arith.constant 0 : index
    %4 = vector.load %arg4[%c0_4, %c0_5] : memref<32x1xf32, #tpu.memory_space<vmem>>, vector<32x1xf32>
    %5 = vector.broadcast %4 : vector<32x1xf32> to vector<32x256xf32>
    %6 = arith.addf %3, %5 : vector<32x256xf32>
    %7 = vector.extract_strided_slice %6 {offsets = [8, 0], sizes = [8, 256], strides = [1, 1]} : vector<32x256xf32> to vector<8x256xf32>
    %8 = arith.truncf %7 : vector<8x256xf32> to vector<8x256xbf16>
    %c0_6 = arith.constant 0 : index
    %c0_7 = arith.constant 0 : index
    %c0_8 = arith.constant 0 : index
    %9 = vector.load %arg5[%c0_6, %c0_7, %c0_8] : memref<1x8x256xbf16, #tpu.memory_space<vmem>>, vector<1x8x256xbf16>
    %10 = vector.shape_cast %9 : vector<1x8x256xbf16> to vector<8x256xbf16>
    %11 = vector.shape_cast %8 : vector<8x256xbf16> to vector<1x8x256xbf16>
    tpu.vector_store %arg5[%c0_6, %c0_7, %c0_8], %11 {strides = array<i32>} : memref<1x8x256xbf16, #tpu.memory_space<vmem>>, vector<1x8x256xbf16>,
    %12 = vector.extract_strided_slice %6 {offsets = [24, 0], sizes = [2, 256], strides = [1, 1]} : vector<32x256xf32> to vector<2x256xf32>
    %c0_9 = arith.constant 0 : index
    %c0_10 = arith.constant 0 : index
    %c0_11 = arith.constant 0 : index
    %13 = vector.load %arg8[%c0_9, %c0_10, %c0_11] : memref<1x2x256xf32, #tpu.memory_space<vmem>>, vector<1x2x256xf32>
    %14 = vector.shape_cast %13 : vector<1x2x256xf32> to vector<2x256xf32>
    %15 = vector.shape_cast %12 : vector<2x256xf32> to vector<1x2x256xf32>
    tpu.vector_store %arg8[%c0_9, %c0_10, %c0_11], %15 {strides = array<i32>} : memref<1x2x256xf32, #tpu.memory_space<vmem>>, vector<1x2x256xf32>,
    %c1_i32 = arith.constant 1 : i32
    %16 = arith.cmpi eq, %arg1, %c1_i32 : i32
    %17 = arith.extui %16 : i1 to i32
    %c0_i32 = arith.constant 0 : i32
    %18 = arith.cmpi ne, %17, %c0_i32 : i32
    scf.if %18 {
      %19 = vector.extract_strided_slice %6 {offsets = [0, 0], sizes = [8, 256], strides = [1, 1]} : vector<32x256xf32> to vector<8x256xf32>
      %20 = arith.truncf %19 : vector<8x256xf32> to vector<8x256xbf16>
      %c0_12 = arith.constant 0 : index
      %c0_13 = arith.constant 0 : index
      %21 = vector.load %arg6[%c0_12, %c0_13] : memref<8x256xbf16, #tpu.memory_space<vmem>>, vector<8x256xbf16>
      tpu.vector_store %arg6[%c0_12, %c0_13], %20 {strides = array<i32>} : memref<8x256xbf16, #tpu.memory_space<vmem>>, vector<8x256xbf16>,
      %22 = vector.extract_strided_slice %6 {offsets = [16, 0], sizes = [8, 256], strides = [1, 1]} : vector<32x256xf32> to vector<8x256xf32>
      %23 = arith.truncf %22 : vector<8x256xf32> to vector<8x256xbf16>
      %c0_14 = arith.constant 0 : index
      %c0_15 = arith.constant 0 : index
      %24 = vector.load %arg7[%c0_14, %c0_15] : memref<8x256xbf16, #tpu.memory_space<vmem>>, vector<8x256xbf16>
      tpu.vector_store %arg7[%c0_14, %c0_15], %23 {strides = array<i32>} : memref<8x256xbf16, #tpu.memory_space<vmem>>, vector<8x256xbf16>,
    } else {
    }
    return
  }
  func.func @transform_0(%arg0: i32, %arg1: i32) -> (i32, i32, i32) {
    %c0_i32 = arith.constant 0 : i32
    %c0_i32_0 = arith.constant 0 : i32
    return %arg1, %c0_i32, %arg0 : i32, i32, i32
  }
  func.func @transform_1(%arg0: i32, %arg1: i32) -> (i32, i32) {
    %c0_i32 = arith.constant 0 : i32
    %c0_i32_0 = arith.constant 0 : i32
    %c0_i32_1 = arith.constant 0 : i32
    return %c0_i32, %c0_i32_0 : i32, i32
  }
  func.func @transform_2(%arg0: i32, %arg1: i32) -> (i32, i32) {
    %c0_i32 = arith.constant 0 : i32
    %c0_i32_0 = arith.constant 0 : i32
    %c0_i32_1 = arith.constant 0 : i32
    return %c0_i32, %c0_i32_0 : i32, i32
  }
  func.func @transform_3(%arg0: i32, %arg1: i32) -> (i32, i32, i32) {
    %c0_i32 = arith.constant 0 : i32
    %c0_i32_0 = arith.constant 0 : i32
    return %arg1, %c0_i32, %arg0 : i32, i32, i32
  }
  func.func @transform_4(%arg0: i32, %arg1: i32) -> (i32, i32) {
    %c0_i32 = arith.constant 0 : i32
    %c0_i32_0 = arith.constant 0 : i32
    return %c0_i32, %arg0 : i32, i32
  }
  func.func @transform_5(%arg0: i32, %arg1: i32) -> (i32, i32) {
    %c0_i32 = arith.constant 0 : i32
    %c0_i32_0 = arith.constant 0 : i32
    return %c0_i32, %arg0 : i32, i32
  }
  func.func @transform_6(%arg0: i32, %arg1: i32) -> (i32, i32, i32) {
    %c0_i32 = arith.constant 0 : i32
    %c0_i32_0 = arith.constant 0 : i32
    return %arg1, %c0_i32, %arg0 : i32, i32, i32
  }
}

module attributes {stable_mosaic.version = 11 : i64} {
  func.func @_eda_attn_out_kernel(%arg0: i32, %arg1: i32, %arg2: memref<8x256xbf16, #tpu.memory_space<vmem>>, %arg3: memref<8x256xbf16, #tpu.memory_space<vmem>>, %arg4: memref<8x256xbf16, #tpu.memory_space<vmem>>, %arg5: memref<8x256xbf16, #tpu.memory_space<vmem>>, %arg6: memref<1x8x256xbf16, #tpu.memory_space<vmem>>, %arg7: memref<1x2x256xf32, #tpu.memory_space<vmem>>, %arg8: memref<1x2x256xf32, #tpu.memory_space<vmem>>, %arg9: memref<4x8xf32, #tpu.memory_space<vmem>>, %arg10: memref<4x1xf32, #tpu.memory_space<vmem>>, %arg11: memref<1x4x256xf32, #tpu.memory_space<vmem>>) attributes {dimension_semantics = [#tpu.dimension_semantics<parallel>, #tpu.dimension_semantics<parallel>], iteration_bounds = array<i64: 1, 2>, scalar_prefetch = 0 : i64, scratch_operands = 0 : i64, tpu.core_type = #tpu.core_type<tc>, window_params = [{transform_indices = @transform_0, window_bounds = array<i64: 8, 256>}, {transform_indices = @transform_1, window_bounds = array<i64: 8, 256>}, {transform_indices = @transform_2, window_bounds = array<i64: 8, 256>}, {transform_indices = @transform_3, window_bounds = array<i64: 8, 256>}, {transform_indices = @transform_4, window_bounds = array<i64: 1, 8, 256>}, {transform_indices = @transform_5, window_bounds = array<i64: 1, 2, 256>}, {transform_indices = @transform_6, window_bounds = array<i64: 1, 2, 256>}, {pipeline_mode = #tpu.pipeline_mode<synchronous>, transform_indices = @transform_7, window_bounds = array<i64: 4, 8>}, {pipeline_mode = #tpu.pipeline_mode<synchronous>, transform_indices = @transform_8, window_bounds = array<i64: 4, 1>}, {transform_indices = @transform_9, window_bounds = array<i64: 1, 4, 256>}]} {
    %c0 = arith.constant 0 : index
    %c0_0 = arith.constant 0 : index
    %c0_1 = arith.constant 0 : index
    %0 = vector.load %arg7[%c0, %c0_0, %c0_1] : memref<1x2x256xf32, #tpu.memory_space<vmem>>, vector<1x2x256xf32>
    %1 = vector.shape_cast %0 : vector<1x2x256xf32> to vector<2x256xf32>
    %c0_2 = arith.constant 0 : index
    %c0_3 = arith.constant 0 : index
    %c0_4 = arith.constant 0 : index
    %2 = vector.load %arg8[%c0_2, %c0_3, %c0_4] : memref<1x2x256xf32, #tpu.memory_space<vmem>>, vector<1x2x256xf32>
    %3 = vector.shape_cast %2 : vector<1x2x256xf32> to vector<2x256xf32>
    %4 = tpu.iota {dimensions = array<i32: 0>} : vector<8x1xi32>
    %c2_i32 = arith.constant 2 : i32
    %5 = vector.broadcast %c2_i32 : i32 to vector<8x1xi32>
    %6 = arith.cmpi slt, %4, %5 : vector<8x1xi32>
    %c0_5 = arith.constant 0 : index
    %c0_6 = arith.constant 0 : index
    %7 = vector.load %arg2[%c0_5, %c0_6] : memref<8x256xbf16, #tpu.memory_space<vmem>>, vector<8x256xbf16>
    %8 = arith.extf %7 : vector<8x256xbf16> to vector<8x256xf32>
    %9 = vector.extract_strided_slice %1 {offsets = [0, 0], sizes = [1, 256], strides = [1, 1]} : vector<2x256xf32> to vector<1x256xf32>
    %10 = vector.broadcast %9 : vector<1x256xf32> to vector<8x256xf32>
    %11 = arith.subf %8, %10 : vector<8x256xf32>
    %c0_7 = arith.constant 0 : index
    %c0_8 = arith.constant 0 : index
    %12 = vector.load %arg3[%c0_7, %c0_8] : memref<8x256xbf16, #tpu.memory_space<vmem>>, vector<8x256xbf16>
    %13 = arith.extf %12 : vector<8x256xbf16> to vector<8x256xf32>
    %14 = vector.extract_strided_slice %3 {offsets = [0, 0], sizes = [1, 256], strides = [1, 1]} : vector<2x256xf32> to vector<1x256xf32>
    %15 = vector.broadcast %14 : vector<1x256xf32> to vector<8x256xf32>
    %16 = arith.subf %13, %15 : vector<8x256xf32>
    %17 = arith.mulf %16, %11 : vector<8x256xf32>
    %cst = arith.constant 5.000000e-01 : f32
    %18 = vector.broadcast %cst : f32 to vector<8x256xf32>
    %19 = arith.mulf %17, %18 : vector<8x256xf32>
    %cst_9 = arith.constant 0xFF800000 : f32
    %20 = vector.shape_cast %6 : vector<8x1xi1> to vector<8x1xi1>
    %21 = vector.broadcast %20 : vector<8x1xi1> to vector<8x256xi1>
    %22 = vector.broadcast %cst_9 : f32 to vector<8x256xf32>
    %23 = arith.select %21, %19, %22 : vector<8x256xi1>, vector<8x256xf32>
    %cst_10 = arith.constant dense<0xFF800000> : vector<256xf32>
    %24 = vector.multi_reduction <maximumf>, %23, %cst_10 [0] : vector<8x256xf32> to vector<256xf32>
    %25 = vector.shape_cast %24 : vector<256xf32> to vector<1x256xf32>
    %26 = vector.broadcast %25 : vector<1x256xf32> to vector<8x256xf32>
    %27 = arith.subf %23, %26 : vector<8x256xf32>
    %28 = math.exp %27 : vector<8x256xf32>
    %cst_11 = arith.constant 0.000000e+00 : f32
    %29 = vector.shape_cast %6 : vector<8x1xi1> to vector<8x1xi1>
    %30 = vector.broadcast %29 : vector<8x1xi1> to vector<8x256xi1>
    %31 = vector.broadcast %cst_11 : f32 to vector<8x256xf32>
    %32 = arith.select %30, %28, %31 : vector<8x256xi1>, vector<8x256xf32>
    %cst_12 = arith.constant dense<0.000000e+00> : vector<256xf32>
    %33 = vector.multi_reduction <add>, %32, %cst_12 [0] : vector<8x256xf32> to vector<256xf32>
    %34 = vector.shape_cast %33 : vector<256xf32> to vector<1x256xf32>
    %35 = tpu.reciprocal %34 {approx = true} : vector<1x256xf32> -> vector<1x256xf32>
    %36 = vector.broadcast %35 : vector<1x256xf32> to vector<8x256xf32>
    %37 = arith.mulf %32, %36 : vector<8x256xf32>
    %c0_13 = arith.constant 0 : index
    %c0_14 = arith.constant 0 : index
    %38 = vector.load %arg4[%c0_13, %c0_14] : memref<8x256xbf16, #tpu.memory_space<vmem>>, vector<8x256xbf16>
    %39 = arith.extf %38 : vector<8x256xbf16> to vector<8x256xf32>
    %40 = vector.extract_strided_slice %1 {offsets = [1, 0], sizes = [1, 256], strides = [1, 1]} : vector<2x256xf32> to vector<1x256xf32>
    %41 = vector.broadcast %40 : vector<1x256xf32> to vector<8x256xf32>
    %42 = arith.subf %39, %41 : vector<8x256xf32>
    %c0_15 = arith.constant 0 : index
    %c0_16 = arith.constant 0 : index
    %43 = vector.load %arg5[%c0_15, %c0_16] : memref<8x256xbf16, #tpu.memory_space<vmem>>, vector<8x256xbf16>
    %44 = arith.extf %43 : vector<8x256xbf16> to vector<8x256xf32>
    %45 = vector.extract_strided_slice %3 {offsets = [1, 0], sizes = [1, 256], strides = [1, 1]} : vector<2x256xf32> to vector<1x256xf32>
    %46 = vector.broadcast %45 : vector<1x256xf32> to vector<8x256xf32>
    %47 = arith.subf %44, %46 : vector<8x256xf32>
    %48 = arith.mulf %47, %42 : vector<8x256xf32>
    %cst_17 = arith.constant 5.000000e-01 : f32
    %49 = vector.broadcast %cst_17 : f32 to vector<8x256xf32>
    %50 = arith.mulf %48, %49 : vector<8x256xf32>
    %cst_18 = arith.constant 0xFF800000 : f32
    %51 = vector.shape_cast %6 : vector<8x1xi1> to vector<8x1xi1>
    %52 = vector.broadcast %51 : vector<8x1xi1> to vector<8x256xi1>
    %53 = vector.broadcast %cst_18 : f32 to vector<8x256xf32>
    %54 = arith.select %52, %50, %53 : vector<8x256xi1>, vector<8x256xf32>
    %cst_19 = arith.constant dense<0xFF800000> : vector<256xf32>
    %55 = vector.multi_reduction <maximumf>, %54, %cst_19 [0] : vector<8x256xf32> to vector<256xf32>
    %56 = vector.shape_cast %55 : vector<256xf32> to vector<1x256xf32>
    %57 = vector.broadcast %56 : vector<1x256xf32> to vector<8x256xf32>
    %58 = arith.subf %54, %57 : vector<8x256xf32>
    %59 = math.exp %58 : vector<8x256xf32>
    %cst_20 = arith.constant 0.000000e+00 : f32
    %60 = vector.shape_cast %6 : vector<8x1xi1> to vector<8x1xi1>
    %61 = vector.broadcast %60 : vector<8x1xi1> to vector<8x256xi1>
    %62 = vector.broadcast %cst_20 : f32 to vector<8x256xf32>
    %63 = arith.select %61, %59, %62 : vector<8x256xi1>, vector<8x256xf32>
    %cst_21 = arith.constant dense<0.000000e+00> : vector<256xf32>
    %64 = vector.multi_reduction <add>, %63, %cst_21 [0] : vector<8x256xf32> to vector<256xf32>
    %65 = vector.shape_cast %64 : vector<256xf32> to vector<1x256xf32>
    %66 = tpu.reciprocal %65 {approx = true} : vector<1x256xf32> -> vector<1x256xf32>
    %67 = vector.broadcast %66 : vector<1x256xf32> to vector<8x256xf32>
    %68 = arith.mulf %63, %67 : vector<8x256xf32>
    %c0_22 = arith.constant 0 : index
    %c0_23 = arith.constant 0 : index
    %c0_24 = arith.constant 0 : index
    %69 = vector.load %arg6[%c0_22, %c0_23, %c0_24] : memref<1x8x256xbf16, #tpu.memory_space<vmem>>, vector<1x8x256xbf16>
    %70 = vector.shape_cast %69 : vector<1x8x256xbf16> to vector<8x256xbf16>
    %71 = arith.extf %70 : vector<8x256xbf16> to vector<8x256xf32>
    %72 = arith.mulf %71, %37 : vector<8x256xf32>
    %73 = arith.mulf %72, %68 : vector<8x256xf32>
    %c0_25 = arith.constant 0 : index
    %c0_26 = arith.constant 0 : index
    %74 = vector.load %arg9[%c0_25, %c0_26] : memref<4x8xf32, #tpu.memory_space<vmem>>, vector<4x8xf32>
    %cst_27 = arith.constant dense<0.000000e+00> : vector<4x256xf32>
    %75 = tpu.matmul %74, %73, %cst_27 {dimension_numbers = #tpu.dot_dimension_numbers<[1], [0], [0], [1], [0, 0, 1, 1], [], []>} : vector<4x8xf32>, vector<8x256xf32>, vector<4x256xf32> -> vector<4x256xf32>
    %c0_28 = arith.constant 0 : index
    %c0_29 = arith.constant 0 : index
    %76 = vector.load %arg10[%c0_28, %c0_29] : memref<4x1xf32, #tpu.memory_space<vmem>>, vector<4x1xf32>
    %77 = vector.broadcast %76 : vector<4x1xf32> to vector<4x256xf32>
    %78 = arith.addf %75, %77 : vector<4x256xf32>
    %c0_30 = arith.constant 0 : index
    %c0_31 = arith.constant 0 : index
    %c0_32 = arith.constant 0 : index
    %79 = vector.load %arg11[%c0_30, %c0_31, %c0_32] : memref<1x4x256xf32, #tpu.memory_space<vmem>>, vector<1x4x256xf32>
    %80 = vector.shape_cast %79 : vector<1x4x256xf32> to vector<4x256xf32>
    %81 = vector.shape_cast %78 : vector<4x256xf32> to vector<1x4x256xf32>
    tpu.vector_store %arg11[%c0_30, %c0_31, %c0_32], %81 {strides = array<i32>} : memref<1x4x256xf32, #tpu.memory_space<vmem>>, vector<1x4x256xf32>,
    return
  }
  func.func @transform_0(%arg0: i32, %arg1: i32) -> (i32, i32) {
    %c0_i32 = arith.constant 0 : i32
    %c0_i32_0 = arith.constant 0 : i32
    return %c0_i32, %arg0 : i32, i32
  }
  func.func @transform_1(%arg0: i32, %arg1: i32) -> (i32, i32) {
    %c0_i32 = arith.constant 0 : i32
    %c0_i32_0 = arith.constant 0 : i32
    return %c0_i32, %arg0 : i32, i32
  }
  func.func @transform_2(%arg0: i32, %arg1: i32) -> (i32, i32) {
    %c0_i32 = arith.constant 0 : i32
    %c0_i32_0 = arith.constant 0 : i32
    return %c0_i32, %arg0 : i32, i32
  }
  func.func @transform_3(%arg0: i32, %arg1: i32) -> (i32, i32) {
    %c0_i32 = arith.constant 0 : i32
    %c0_i32_0 = arith.constant 0 : i32
    return %c0_i32, %arg0 : i32, i32
  }
  func.func @transform_4(%arg0: i32, %arg1: i32) -> (i32, i32, i32) {
    %c0_i32 = arith.constant 0 : i32
    %c0_i32_0 = arith.constant 0 : i32
    return %arg1, %c0_i32, %arg0 : i32, i32, i32
  }
  func.func @transform_5(%arg0: i32, %arg1: i32) -> (i32, i32, i32) {
    %c0_i32 = arith.constant 0 : i32
    %c0_i32_0 = arith.constant 0 : i32
    return %arg1, %c0_i32, %arg0 : i32, i32, i32
  }
  func.func @transform_6(%arg0: i32, %arg1: i32) -> (i32, i32, i32) {
    %c0_i32 = arith.constant 0 : i32
    %c0_i32_0 = arith.constant 0 : i32
    return %arg1, %c0_i32, %arg0 : i32, i32, i32
  }
  func.func @transform_7(%arg0: i32, %arg1: i32) -> (i32, i32) {
    %c0_i32 = arith.constant 0 : i32
    %c0_i32_0 = arith.constant 0 : i32
    %c0_i32_1 = arith.constant 0 : i32
    return %c0_i32, %c0_i32_0 : i32, i32
  }
  func.func @transform_8(%arg0: i32, %arg1: i32) -> (i32, i32) {
    %c0_i32 = arith.constant 0 : i32
    %c0_i32_0 = arith.constant 0 : i32
    %c0_i32_1 = arith.constant 0 : i32
    return %c0_i32, %c0_i32_0 : i32, i32
  }
  func.func @transform_9(%arg0: i32, %arg1: i32) -> (i32, i32, i32) {
    %c0_i32 = arith.constant 0 : i32
    %c0_i32_0 = arith.constant 0 : i32
    return %arg1, %c0_i32, %arg0 : i32, i32, i32
  }
}

</mosaic_0001>

<llo_original>
// kernel: eda_forward.3
$region0: #{eda_forward.3}
  #allocation0 [shape = 'u32[]', space=smem, size = 0x4, offset = 0x4, fixed_abs, tag = 'smem constant byte address 0x4 - core index']
  #allocation1 [shape = 'u32[144,128]{1,0:T(1,128)}', space=vmem, size = 0x12000, scoped, tag = 'internal scratch']
  %s0 = inlined_call_operand.vmem [shape: bf16[8,256], index: 0, kind: input, shape index: {}]
  %s1 = inlined_call_operand.vmem [shape: bf16[8,256], index: 1, kind: input, shape index: {}]
  %s2 = inlined_call_operand.vmem [shape: bf16[8,256], index: 2, kind: input, shape index: {}]
  %s3 = inlined_call_operand.vmem [shape: bf16[8,256], index: 3, kind: input, shape index: {}]
  %s4 = inlined_call_operand.vmem [shape: bf16[2,8,256], index: 4, kind: input, shape index: {}]
  %s5 = inlined_call_operand.vmem [shape: f32[2,2,256], index: 5, kind: input, shape index: {}]
  %s6 = inlined_call_operand.vmem [shape: f32[2,2,256], index: 6, kind: input, shape index: {}]
  %s7 = inlined_call_operand.vmem [shape: f32[4,8], index: 7, kind: input, shape index: {}]
  %s8 = inlined_call_operand.vmem [shape: f32[4,1], index: 8, kind: input, shape index: {}]
  %s9 = inlined_call_operand.vmem [shape: f32[2,4,256], index: 9, kind: output, shape index: {}]
  %s10 = sld [smem:[#allocation0]]
  $region69: #{eda_forward.3} parent=0
    _
  %s12 = ssub.s32 1, %s10
  %s13 = scalar_select 0, %s12, %s10
  loop: start=0, step=1, limit=4
  $region2: #{eda_forward.3} parent=0 // loop_pre_header
    _
  $region3: #{eda_forward.3} parent=0 // loop_header
    %s15 = sphi 0, %s19
    %p16 = scmp.ge.s32.totalorder %s15, 4
    %s22 = sphi 0, %s34
    %s23 = sphi 0, %s30
    %s24 = sphi 0, %s22
    %s25 = sphi 0, %s23
    %s26 = sphi 0, %s24
    %s27 = sphi 0, %s25
    %s37 = sphi 0, %s39
    %s40 = sphi 0, %s37
    %s41 = sphi 0, %s40
    %s57 = sphi 0, %s41
    %s63 = sphi 0, %s65
    %s66 = sphi 0, %s63
    %s67 = sphi 0, %s66
    %s83 = sphi 0, %s67
    %s89 = sphi 0, %s91
    %s92 = sphi 0, %s89
    %s93 = sphi 0, %s92
    %s109 = sphi 0, %s93
    %s115 = sphi 0, %s117
    %s118 = sphi 0, %s115
    %s119 = sphi 0, %s118
    %s135 = sphi 0, %s119
    %s143 = sphi 0, %s145
    %s146 = sphi 0, %s143
    %s147 = sphi 0, %s146
    %s163 = sphi 0, %s147
    %s171 = sphi 0, %s173
    %s174 = sphi 0, %s171
    %s175 = sphi 0, %s174
    %s191 = sphi 0, %s175
    %s199 = sphi 0, %s201
    %s202 = sphi 0, %s199
    %s203 = sphi 0, %s202
    %s219 = sphi 0, %s203
    %s223 = sphi 0, %s223
    %s225 = sphi 0, %s223
    %s226 = sphi 0, %s225
    %s240 = sphi 0, %s226
    %s244 = sphi 0, %s244
    %s246 = sphi 0, %s244
    %s247 = sphi 0, %s246
    %s261 = sphi 0, %s247
    %s269 = sphi 0, %s271
    %s272 = sphi 0, %s269
    %s273 = sphi 0, %s272
    %s289 = sphi 0, %s273
  $region4: #{eda_forward.3} parent=0 // loop_header_branch
    %18 = sbr.rel (%p16) target = $region8
  $region5: #{eda_forward.3} parent=0 // loop_body
    %s20 = ssub.s32 %s15, 1
    %s21 = ssub.s32 %s15, 2
    %s28 = sadd.s32 1, %s23
    %p29 = scmp.ge.s32.totalorder %s28, 2
    %s30 = scalar_select %p29, 0, %s28
    %s31 = sadd.s32 1, %s22
    %s32 = scalar_select %p29, %s31, %s22
    %p33 = scmp.ge.s32.totalorder %s32, 1
    %s34 = scalar_select %p33, 0, %s32
    %s35 = ssub.s32 %s22, %s34
    %p36 = scmp.eq.s32.totalorder %s35, 0
    %s38 = sadd.s32 %s37, 1
    %s39 = scalar_select %p36, %s37, %s38
    %p42 = pneg %p36
    %p43 = scmp.eq.s32.totalorder %s15, 1
    %p44 = por %p42, %p43
    %p45 = scmp.ne.s32.totalorder %s37, %s40
    %p46 = scmp.eq.s32.totalorder %s15, 0
    %p47 = por %p45, %p46
    %p48 = scmp.ne.s32.totalorder %s37, %s40
    %p49 = scmp.eq.s32.totalorder %s20, 1
    %p50 = por %p48, %p49
    %p51 = scmp.ne.s32.totalorder %s40, %s41
    %p52 = scmp.eq.s32.totalorder %s20, 0
    %p53 = por %p51, %p52
    %p54 = scmp.ne.s32.totalorder %s40, %s41
    %p55 = scmp.eq.s32.totalorder %s21, 1
    %p56 = por %p54, %p55
    %p58 = scmp.ne.s32.totalorder %s41, %s57
    %p59 = scmp.eq.s32.totalorder %s21, 0
    %p60 = por %p58, %p59
    %s61 = ssub.s32 %s22, %s34
    %p62 = scmp.eq.s32.totalorder %s61, 0
    %s64 = sadd.s32 %s63, 1
    %s65 = scalar_select %p62, %s63, %s64
    %p68 = pneg %p62
    %p69 = scmp.eq.s32.totalorder %s15, 1
    %p70 = por %p68, %p69
    %p71 = scmp.ne.s32.totalorder %s63, %s66
    %p72 = scmp.eq.s32.totalorder %s15, 0
    %p73 = por %p71, %p72
    %p74 = scmp.ne.s32.totalorder %s63, %s66
    %p75 = scmp.eq.s32.totalorder %s20, 1
    %p76 = por %p74, %p75
    %p77 = scmp.ne.s32.totalorder %s66, %s67
    %p78 = scmp.eq.s32.totalorder %s20, 0
    %p79 = por %p77, %p78
    %p80 = scmp.ne.s32.totalorder %s66, %s67
    %p81 = scmp.eq.s32.totalorder %s21, 1
    %p82 = por %p80, %p81
    %p84 = scmp.ne.s32.totalorder %s67, %s83
    %p85 = scmp.eq.s32.totalorder %s21, 0
    %p86 = por %p84, %p85
    %s87 = ssub.s32 %s22, %s34
    %p88 = scmp.eq.s32.totalorder %s87, 0
    %s90 = sadd.s32 %s89, 1
    %s91 = scalar_select %p88, %s89, %s90
    %p94 = pneg %p88
    %p95 = scmp.eq.s32.totalorder %s15, 1
    %p96 = por %p94, %p95
    %p97 = scmp.ne.s32.totalorder %s89, %s92
    %p98 = scmp.eq.s32.totalorder %s15, 0
    %p99 = por %p97, %p98
    %p100 = scmp.ne.s32.totalorder %s89, %s92
    %p101 = scmp.eq.s32.totalorder %s20, 1
    %p102 = por %p100, %p101
    %p103 = scmp.ne.s32.totalorder %s92, %s93
    %p104 = scmp.eq.s32.totalorder %s20, 0
    %p105 = por %p103, %p104
    %p106 = scmp.ne.s32.totalorder %s92, %s93
    %p107 = scmp.eq.s32.totalorder %s21, 1
    %p108 = por %p106, %p107
    %p110 = scmp.ne.s32.totalorder %s93, %s109
    %p111 = scmp.eq.s32.totalorder %s21, 0
    %p112 = por %p110, %p111
    %s113 = ssub.s32 %s22, %s34
    %p114 = scmp.eq.s32.totalorder %s113, 0
    %s116 = sadd.s32 %s115, 1
    %s117 = scalar_select %p114, %s115, %s116
    %p120 = pneg %p114
    %p121 = scmp.eq.s32.totalorder %s15, 1
    %p122 = por %p120, %p121
    %p123 = scmp.ne.s32.totalorder %s115, %s118
    %p124 = scmp.eq.s32.totalorder %s15, 0
    %p125 = por %p123, %p124
    %p126 = scmp.ne.s32.totalorder %s115, %s118
    %p127 = scmp.eq.s32.totalorder %s20, 1
    %p128 = por %p126, %p127
    %p129 = scmp.ne.s32.totalorder %s118, %s119
    %p130 = scmp.eq.s32.totalorder %s20, 0
    %p131 = por %p129, %p130
    %p132 = scmp.ne.s32.totalorder %s118, %s119
    %p133 = scmp.eq.s32.totalorder %s21, 1
    %p134 = por %p132, %p133
    %p136 = scmp.ne.s32.totalorder %s119, %s135
    %p137 = scmp.eq.s32.totalorder %s21, 0
    %p138 = por %p136, %p137
    %s139 = ssub.s32 %s23, %s30
    %s140 = ssub.s32 %s22, %s34
    %s141 = sor.u32 %s139, %s140
    %p142 = scmp.eq.s32.totalorder %s141, 0
    %s144 = sadd.s32 %s143, 1
    %s145 = scalar_select %p142, %s143, %s144
    %p148 = pneg %p142
    %p149 = scmp.eq.s32.totalorder %s15, 1
    %p150 = por %p148, %p149
    %p151 = scmp.ne.s32.totalorder %s143, %s146
    %p152 = scmp.eq.s32.totalorder %s15, 0
    %p153 = por %p151, %p152
    %p154 = scmp.ne.s32.totalorder %s143, %s146
    %p155 = scmp.eq.s32.totalorder %s20, 1
    %p156 = por %p154, %p155
    %p157 = scmp.ne.s32.totalorder %s146, %s147
    %p158 = scmp.eq.s32.totalorder %s20, 0
    %p159 = por %p157, %p158
    %p160 = scmp.ne.s32.totalorder %s146, %s147
    %p161 = scmp.eq.s32.totalorder %s21, 1
    %p162 = por %p160, %p161
    %p164 = scmp.ne.s32.totalorder %s147, %s163
    %p165 = scmp.eq.s32.totalorder %s21, 0
    %p166 = por %p164, %p165
    %s167 = ssub.s32 %s23, %s30
    %s168 = ssub.s32 %s22, %s34
    %s169 = sor.u32 %s167, %s168
    %p170 = scmp.eq.s32.totalorder %s169, 0
    %s172 = sadd.s32 %s171, 1
    %s173 = scalar_select %p170, %s171, %s172
    %p176 = pneg %p170
    %p177 = scmp.eq.s32.totalorder %s15, 1
    %p178 = por %p176, %p177
    %p179 = scmp.ne.s32.totalorder %s171, %s174
    %p180 = scmp.eq.s32.totalorder %s15, 0
    %p181 = por %p179, %p180
    %p182 = scmp.ne.s32.totalorder %s171, %s174
    %p183 = scmp.eq.s32.totalorder %s20, 1
    %p184 = por %p182, %p183
    %p185 = scmp.ne.s32.totalorder %s174, %s175
    %p186 = scmp.eq.s32.totalorder %s20, 0
    %p187 = por %p185, %p186
    %p188 = scmp.ne.s32.totalorder %s174, %s175
    %p189 = scmp.eq.s32.totalorder %s21, 1
    %p190 = por %p188, %p189
    %p192 = scmp.ne.s32.totalorder %s175, %s191
    %p193 = scmp.eq.s32.totalorder %s21, 0
    %p194 = por %p192, %p193
    %s195 = ssub.s32 %s23, %s30
    %s196 = ssub.s32 %s22, %s34
    %s197 = sor.u32 %s195, %s196
    %p198 = scmp.eq.s32.totalorder %s197, 0
    %s200 = sadd.s32 %s199, 1
    %s201 = scalar_select %p198, %s199, %s200
    %p204 = pneg %p198
    %p205 = scmp.eq.s32.totalorder %s15, 1
    %p206 = por %p204, %p205
    %p207 = scmp.ne.s32.totalorder %s199, %s202
    %p208 = scmp.eq.s32.totalorder %s15, 0
    %p209 = por %p207, %p208
    %p210 = scmp.ne.s32.totalorder %s199, %s202
    %p211 = scmp.eq.s32.totalorder %s20, 1
    %p212 = por %p210, %p211
    %p213 = scmp.ne.s32.totalorder %s202, %s203
    %p214 = scmp.eq.s32.totalorder %s20, 0
    %p215 = por %p213, %p214
    %p216 = scmp.ne.s32.totalorder %s202, %s203
    %p217 = scmp.eq.s32.totalorder %s21, 1
    %p218 = por %p216, %p217
    %p220 = scmp.ne.s32.totalorder %s203, %s219
    %p221 = scmp.eq.s32.totalorder %s21, 0
    %p222 = por %p220, %p221
    %s224 = sadd.s32 %s223, 1
    %p227 = scmp.eq.s32.totalorder %s15, 1
    %p228 = scmp.ne.s32.totalorder %s223, %s225
    %p229 = scmp.eq.s32.totalorder %s15, 0
    %p230 = por %p228, %p229
    %p231 = scmp.ne.s32.totalorder %s223, %s225
    %p232 = scmp.eq.s32.totalorder %s20, 1
    %p233 = por %p231, %p232
    %p234 = scmp.ne.s32.totalorder %s225, %s226
    %p235 = scmp.eq.s32.totalorder %s20, 0
    %p236 = por %p234, %p235
    %p237 = scmp.ne.s32.totalorder %s225, %s226
    %p238 = scmp.eq.s32.totalorder %s21, 1
    %p239 = por %p237, %p238
    %p241 = scmp.ne.s32.totalorder %s226, %s240
    %p242 = scmp.eq.s32.totalorder %s21, 0
    %p243 = por %p241, %p242
    %s245 = sadd.s32 %s244, 1
    %p248 = scmp.eq.s32.totalorder %s15, 1
    %p249 = scmp.ne.s32.totalorder %s244, %s246
    %p250 = scmp.eq.s32.totalorder %s15, 0
    %p251 = por %p249, %p250
    %p252 = scmp.ne.s32.totalorder %s244, %s246
    %p253 = scmp.eq.s32.totalorder %s20, 1
    %p254 = por %p252, %p253
    %p255 = scmp.ne.s32.totalorder %s246, %s247
    %p256 = scmp.eq.s32.totalorder %s20, 0
    %p257 = por %p255, %p256
    %p258 = scmp.ne.s32.totalorder %s246, %s247
    %p259 = scmp.eq.s32.totalorder %s21, 1
    %p260 = por %p258, %p259
    %p262 = scmp.ne.s32.totalorder %s247, %s261
    %p263 = scmp.eq.s32.totalorder %s21, 0
    %p264 = por %p262, %p263
    %s265 = ssub.s32 %s23, %s30
    %s266 = ssub.s32 %s22, %s34
    %s267 = sor.u32 %s265, %s266
    %p268 = scmp.eq.s32.totalorder %s267, 0
    %s270 = sadd.s32 %s269, 1
    %s271 = scalar_select %p268, %s269, %s270
    %p274 = pneg %p268
    %p275 = scmp.eq.s32.totalorder %s15, 1
    %p276 = por %p274, %p275
    %p277 = scmp.ne.s32.totalorder %s269, %s272
    %p278 = scmp.eq.s32.totalorder %s15, 0
    %p279 = por %p277, %p278
    %p280 = scmp.ne.s32.totalorder %s269, %s272
    %p281 = scmp.eq.s32.totalorder %s20, 1
    %p282 = por %p280, %p281
    %p283 = scmp.ne.s32.totalorder %s272, %s273
    %p284 = scmp.eq.s32.totalorder %s20, 0
    %p285 = por %p283, %p284
    %p286 = scmp.ne.s32.totalorder %s272, %s273
    %p287 = scmp.eq.s32.totalorder %s21, 1
    %p288 = por %p286, %p287
    %p290 = scmp.ne.s32.totalorder %s273, %s289
    %p291 = scmp.eq.s32.totalorder %s21, 0
    %p292 = por %p290, %p291
    %p293 = scmp.le.s32.totalorder 1, %s15
    %p294 = scmp.lt.s32.totalorder %s15, 3
    %p295 = pnand %p293, %p294
    %p296 = pneg %p295
    // Predicated region
    $region9: #{eda_forward.3} parent=5 // pred_check
      _
    $region10: #{eda_forward.3} parent=5 // pred_check_branch
      %298 = sbr.rel (%p295) target = $region12
    $region11: #{eda_forward.3} parent=5 // pred_region
      %s299 = ssub.s32 %s15, 1
      // Predicated region
      $region13: #{eda_forward.3} parent=11 // pred_check
        %p300 = pneg %p53
      $region14: #{eda_forward.3} parent=11 // pred_check_branch
        %302 = sbr.rel (%p300) target = $region16
      $region15: #{eda_forward.3} parent=11 // pred_region
        %s303 = smul.u32 2, %s24
        %p304 = scmp.lt.s32.totalorder %s303, 1
        %s305 = scalar_select %p304, %s303, 1
        %s306 = smul.addr %s305, 4
        %s307 = scalar_lea.vmem %s0, %s306
        %s308 = smul.u32 2, %s24
      $region16: #{eda_forward.3} parent=11 // pred_fallthru
        _
      // Predicated region
      $region17: #{eda_forward.3} parent=11 // pred_check
        %p309 = pneg %p79
      $region18: #{eda_forward.3} parent=11 // pred_check_branch
        %311 = sbr.rel (%p309) target = $region20
      $region19: #{eda_forward.3} parent=11 // pred_region
        %s312 = smul.u32 2, %s24
        %p313 = scmp.lt.s32.totalorder %s312, 1
        %s314 = scalar_select %p313, %s312, 1
        %s315 = smul.addr %s314, 4
        %s316 = scalar_lea.vmem %s1, %s315
        %s317 = smul.u32 2, %s24
      $region20: #{eda_forward.3} parent=11 // pred_fallthru
        _
      // Predicated region
      $region21: #{eda_forward.3} parent=11 // pred_check
        %p318 = pneg %p105
      $region22: #{eda_forward.3} parent=11 // pred_check_branch
        %320 = sbr.rel (%p318) target = $region24
      $region23: #{eda_forward.3} parent=11 // pred_region
        %s321 = smul.u32 2, %s24
        %p322 = scmp.lt.s32.totalorder %s321, 1
        %s323 = scalar_select %p322, %s321, 1
        %s324 = smul.addr %s323, 4
        %s325 = scalar_lea.vmem %s2, %s324
        %s326 = smul.u32 2, %s24
      $region24: #{eda_forward.3} parent=11 // pred_fallthru
        _
      // Predicated region
      $region25: #{eda_forward.3} parent=11 // pred_check
        %p327 = pneg %p131
      $region26: #{eda_forward.3} parent=11 // pred_check_branch
        %329 = sbr.rel (%p327) target = $region28
      $region27: #{eda_forward.3} parent=11 // pred_region
        %s330 = smul.u32 2, %s24
        %p331 = scmp.lt.s32.totalorder %s330, 1
        %s332 = scalar_select %p331, %s330, 1
        %s333 = smul.addr %s332, 4
        %s334 = scalar_lea.vmem %s3, %s333
        %s335 = smul.u32 2, %s24
      $region28: #{eda_forward.3} parent=11 // pred_fallthru
        _
      // Predicated region
      $region29: #{eda_forward.3} parent=11 // pred_check
        %p336 = pneg %p236
      $region30: #{eda_forward.3} parent=11 // pred_check_branch
        %338 = sbr.rel (%p336) target = $region32
      $region31: #{eda_forward.3} parent=11 // pred_region
        _
      $region32: #{eda_forward.3} parent=11 // pred_fallthru
        _
      // Predicated region
      $region33: #{eda_forward.3} parent=11 // pred_check
        %p339 = pneg %p257
      $region34: #{eda_forward.3} parent=11 // pred_check_branch
        %341 = sbr.rel (%p339) target = $region36
      $region35: #{eda_forward.3} parent=11 // pred_region
        _
      $region36: #{eda_forward.3} parent=11 // pred_fallthru
        _
    $region12: #{eda_forward.3} parent=5 // pred_fallthru
      _
    %p342 = scmp.lt.s32.totalorder %s15, 2
    // Predicated region
    $region37: #{eda_forward.3} parent=5 // pred_check
      %p343 = pneg %p342
    $region38: #{eda_forward.3} parent=5 // pred_check_branch
      %345 = sbr.rel (%p343) target = $region40
    $region39: #{eda_forward.3} parent=5 // pred_region
      // Predicated region
      $region41: #{eda_forward.3} parent=39 // pred_check
        %p346 = pneg %p153
      $region42: #{eda_forward.3} parent=39 // pred_check_branch
        %348 = sbr.rel (%p346) target = $region44
      $region43: #{eda_forward.3} parent=39 // pred_region
        %s349 = smul.u32 2, %s22
        %p350 = scmp.lt.s32.totalorder %s23, 1
        %s351 = scalar_select %p350, %s23, 1
        %p352 = scmp.lt.s32.totalorder %s349, 1
        %s353 = scalar_select %p352, %s349, 1
        %s354 = smul.addr %s351, 2
        %s355 = sadd.s32 %s353, %s354
        %s356 = smul.addr %s355, 4
        %s357 = scalar_lea.vmem %s4, %s356
        %s358 = smul.u32 2, %s22
      $region44: #{eda_forward.3} parent=39 // pred_fallthru
        _
      // Predicated region
      $region45: #{eda_forward.3} parent=39 // pred_check
        %p359 = pneg %p181
      $region46: #{eda_forward.3} parent=39 // pred_check_branch
        %361 = sbr.rel (%p359) target = $region48
      $region47: #{eda_forward.3} parent=39 // pred_region
        %s362 = smul.u32 2, %s22
        %p363 = scmp.lt.s32.totalorder %s23, 1
        %s364 = scalar_select %p363, %s23, 1
        %p365 = scmp.lt.s32.totalorder %s362, 1
        %s366 = scalar_select %p365, %s362, 1
        %s367 = smul.addr %s364, 2
        %s368 = sadd.s32 %s366, %s367
        %s369 = smul.addr %s368, 2
        %s370 = scalar_lea.vmem %s5, %s369
        %s371 = smul.u32 2, %s22
      $region48: #{eda_forward.3} parent=39 // pred_fallthru
        _
      // Predicated region
      $region49: #{eda_forward.3} parent=39 // pred_check
        %p372 = pneg %p209
      $region50: #{eda_forward.3} parent=39 // pred_check_branch
        %374 = sbr.rel (%p372) target = $region52
      $region51: #{eda_forward.3} parent=39 // pred_region
        %s375 = smul.u32 2, %s22
        %p376 = scmp.lt.s32.totalorder %s23, 1
        %s377 = scalar_select %p376, %s23, 1
        %p378 = scmp.lt.s32.totalorder %s375, 1
        %s379 = scalar_select %p378, %s375, 1
        %s380 = smul.addr %s377, 2
        %s381 = sadd.s32 %s379, %s380
        %s382 = smul.addr %s381, 2
        %s383 = scalar_lea.vmem %s6, %s382
        %s384 = smul.u32 2, %s22
      $region52: #{eda_forward.3} parent=39 // pred_fallthru
        _
    $region40: #{eda_forward.3} parent=5 // pred_fallthru
      _
    %p385 = scmp.le.s32.totalorder 1, %s15
    %p386 = scmp.lt.s32.totalorder %s15, 3
    %p387 = pnand %p385, %p386
    %p388 = pneg %p387
    // Predicated region
    $region53: #{eda_forward.3} parent=5 // pred_check
      _
    $region54: #{eda_forward.3} parent=5 // pred_check_branch
      %390 = sbr.rel (%p387) target = $region56
    $region55: #{eda_forward.3} parent=5 // pred_region
      %s391 = ssub.s32 %s15, 1
      %s392 = smul.u32 2, %s24
      %p393 = scmp.lt.s32.totalorder %s392, 1
      %s394 = scalar_select %p393, %s392, 1
      %s395 = smul.addr %s394, 4
      %s396 = scalar_lea.vmem %s0, %s395
      %p397 = pneg %p53
      %p398 = pneg %p50
      %s399 = smul.u32 2, %s24
      %p400 = scmp.lt.s32.totalorder %s399, 1
      %s401 = scalar_select %p400, %s399, 1
      %s402 = smul.addr %s401, 4
      %s403 = scalar_lea.vmem %s1, %s402
      %p404 = pneg %p79
      %p405 = pneg %p76
      %s406 = smul.u32 2, %s24
      %p407 = scmp.lt.s32.totalorder %s406, 1
      %s408 = scalar_select %p407, %s406, 1
      %s409 = smul.addr %s408, 4
      %s410 = scalar_lea.vmem %s2, %s409
      %p411 = pneg %p105
      %p412 = pneg %p102
      %s413 = smul.u32 2, %s24
      %p414 = scmp.lt.s32.totalorder %s413, 1
      %s415 = scalar_select %p414, %s413, 1
      %s416 = smul.addr %s415, 4
      %s417 = scalar_lea.vmem %s3, %s416
      %p418 = pneg %p131
      %p419 = pneg %p128
      %s420 = smul.u32 2, %s24
      %p421 = scmp.lt.s32.totalorder %s25, 1
      %s422 = scalar_select %p421, %s25, 1
      %p423 = scmp.lt.s32.totalorder %s420, 1
      %s424 = scalar_select %p423, %s420, 1
      %s425 = smul.addr %s422, 2
      %s426 = sadd.s32 %s424, %s425
      %s427 = smul.addr %s426, 4
      %s428 = scalar_lea.vmem %s4, %s427
      %p429 = pneg %p159
      %p430 = pneg %p156
      %s431 = smul.u32 2, %s24
      %p432 = scmp.lt.s32.totalorder %s25, 1
      %s433 = scalar_select %p432, %s25, 1
      %p434 = scmp.lt.s32.totalorder %s431, 1
      %s435 = scalar_select %p434, %s431, 1
      %s436 = smul.addr %s433, 2
      %s437 = sadd.s32 %s435, %s436
      %s438 = smul.addr %s437, 2
      %s439 = scalar_lea.vmem %s5, %s438
      %p440 = pneg %p187
      %p441 = pneg %p184
      %s442 = smul.u32 2, %s24
      %p443 = scmp.lt.s32.totalorder %s25, 1
      %s444 = scalar_select %p443, %s25, 1
      %p445 = scmp.lt.s32.totalorder %s442, 1
      %s446 = scalar_select %p445, %s442, 1
      %s447 = smul.addr %s444, 2
      %s448 = sadd.s32 %s446, %s447
      %s449 = smul.addr %s448, 2
      %s450 = scalar_lea.vmem %s6, %s449
      %p451 = pneg %p215
      %p452 = pneg %p212
      %p453 = pneg %p236
      %p454 = pneg %p233
      %p455 = pneg %p257
      %p456 = pneg %p254
      %p457 = pneg %p285
      %p458 = pneg %p282
      %s459 = smul.u32 2, %s24
      %p460 = scmp.lt.s32.totalorder %s25, 1
      %s461 = scalar_select %p460, %s25, 1
      %p462 = scmp.lt.s32.totalorder %s459, 1
      %s463 = scalar_select %p462, %s459, 1
      %s464 = smul.addr %s461, 2
      %s465 = sadd.s32 %s463, %s464
      %s466 = smul.addr %s465, 4
      %s467 = scalar_lea.vmem %s9, %s466
      %s468 = smul.u32 2, %s24
      %p469 = scmp.lt.s32.totalorder %s468, 1
      %s470 = scalar_select %p469, %s468, 1
      %s471 = smul.addr %s470, 4
      %s472 = scalar_lea.vmem %s0, %s471
      %s473 = smul.u32 2, %s24
      %s474 = smul.u32 2, %s24
      %p475 = scmp.lt.s32.totalorder %s474, 1
      %s476 = scalar_select %p475, %s474, 1
      %s477 = smul.addr %s476, 4
      %s478 = scalar_lea.vmem %s1, %s477
      %s479 = smul.u32 2, %s24
      %s480 = smul.u32 2, %s24
      %p481 = scmp.lt.s32.totalorder %s480, 1
      %s482 = scalar_select %p481, %s480, 1
      %s483 = smul.addr %s482, 4
      %s484 = scalar_lea.vmem %s2, %s483
      %s485 = smul.u32 2, %s24
      %s486 = smul.u32 2, %s24
      %p487 = scmp.lt.s32.totalorder %s486, 1
      %s488 = scalar_select %p487, %s486, 1
      %s489 = smul.addr %s488, 4
      %s490 = scalar_lea.vmem %s3, %s489
      %s491 = smul.u32 2, %s24
      %s492 = smul.u32 2, %s24
      %p493 = scmp.lt.s32.totalorder %s25, 1
      %s494 = scalar_select %p493, %s25, 1
      %p495 = scmp.lt.s32.totalorder %s492, 1
      %s496 = scalar_select %p495, %s492, 1
      %s497 = smul.addr %s494, 2
      %s498 = sadd.s32 %s496, %s497
      %s499 = smul.addr %s498, 4
      %s500 = scalar_lea.vmem %s4, %s499
      %s501 = smul.u32 2, %s24
      %s502 = smul.u32 2, %s24
      %p503 = scmp.lt.s32.totalorder %s25, 1
      %s504 = scalar_select %p503, %s25, 1
      %p505 = scmp.lt.s32.totalorder %s502, 1
      %s506 = scalar_select %p505, %s502, 1
      %s507 = smul.addr %s504, 2
      %s508 = sadd.s32 %s506, %s507
      %s509 = smul.addr %s508, 2
      %s510 = scalar_lea.vmem %s5, %s509
      %s511 = smul.u32 2, %s24
      %s512 = smul.u32 2, %s24
      %p513 = scmp.lt.s32.totalorder %s25, 1
      %s514 = scalar_select %p513, %s25, 1
      %p515 = scmp.lt.s32.totalorder %s512, 1
      %s516 = scalar_select %p515, %s512, 1
      %s517 = smul.addr %s514, 2
      %s518 = sadd.s32 %s516, %s517
      %s519 = smul.addr %s518, 2
      %s520 = scalar_lea.vmem %s6, %s519
      %s521 = smul.u32 2, %s24
      %s522 = smul.u32 2, %s24
      %p523 = scmp.lt.s32.totalorder %s25, 1
      %s524 = scalar_select %p523, %s25, 1
      %p525 = scmp.lt.s32.totalorder %s522, 1
      %s526 = scalar_select %p525, %s522, 1
      %s527 = smul.addr %s524, 2
      %s528 = sadd.s32 %s526, %s527
      %s529 = smul.addr %s528, 4
      %s530 = scalar_lea.vmem %s9, %s529
      %s531 = smul.u32 2, %s24
      %v532 = vld [vmem:[%s510] sm:$0xf]
      %v533 = vld [vmem:[%s520] sm:$0xf]
      %v534 = vlaneseq
      %v535 = vshrl.u32 %v534, 7
      %vm536 = vcmp.lt.s32.totalorder %v535, 2
      %v537 = vld [vmem:[%s472] sm:$0xff]
      %v538 = vunpack.c.l.bf16 %v537
      %v539 = vunpack.c.h.bf16 %v537
      %v541 = vlaneseq
      %v542 = vshrl.u32 %v541, 7
      %v543 = vsub.s32 0, %v542
      %v544 = vrot.slane %v532, %v543
      %v545 = vlaneseq
      %v546 = vshrl.u32 %v545, 7
      %v547 = vsub.s32 2, %v546
      %v548 = vrot.slane %v532, %v547
      %v551 = vlaneseq
      %v552 = vshrl.u32 %v551, 7
      %v553 = vsub.s32 0, %v552
      %v554 = vrot.slane %v544, %v553
      %v555 = vlaneseq
      %v556 = vshrl.u32 %v555, 7
      %v557 = vsub.s32 0, %v556
      %v558 = vrot.slane %v548, %v557
      %v559 = vsub.f32 %v538, %v554
      %v560 = vsub.f32 %v539, %v558
      %v561 = vld [vmem:[%s478] sm:$0xff]
      %v562 = vunpack.c.l.bf16 %v561
      %v563 = vunpack.c.h.bf16 %v561
      %v565 = vlaneseq
      %v566 = vshrl.u32 %v565, 7
      %v567 = vsub.s32 0, %v566
      %v568 = vrot.slane %v533, %v567
      %v569 = vlaneseq
      %v570 = vshrl.u32 %v569, 7
      %v571 = vsub.s32 2, %v570
      %v572 = vrot.slane %v533, %v571
      %v575 = vlaneseq
      %v576 = vshrl.u32 %v575, 7
      %v577 = vsub.s32 0, %v576
      %v578 = vrot.slane %v568, %v577
      %v579 = vlaneseq
      %v580 = vshrl.u32 %v579, 7
      %v581 = vsub.s32 0, %v580
      %v582 = vrot.slane %v572, %v581
      %v583 = vsub.f32 %v562, %v578
      %v584 = vsub.f32 %v563, %v582
      %v585 = vmul.f32 %v583, %v559
      %v586 = vmul.f32 %v584, %v560
      %v587 = vmul.f32 %v585, 0.5
      %v588 = vmul.f32 %v586, 0.5
      %v589 = vsel %vm536, 1, 0
      %vm590 = vcmp.eq.s32.totalorder %v589, 1
      %v591 = vsel %vm590, %v587, -inf
      %v592 = vsel %vm590, %v588, -inf
      %v593 = vrot.slane %v591, 4
      %v594 = vmax.f32 %v591, %v593
      %v595 = vrot.slane %v594, 2
      %v596 = vmax.f32 %v594, %v595
      %v597 = vrot.slane %v596, 1
      %v598 = vmax.f32 %v596, %v597
      %v599 = vrot.slane %v592, 4
      %v600 = vmax.f32 %v592, %v599
      %v601 = vrot.slane %v600, 2
      %v602 = vmax.f32 %v600, %v601
      %v603 = vrot.slane %v602, 1
      %v604 = vmax.f32 %v602, %v603
      %v605 = vsub.f32 %v591, %v598
      %v606 = vsub.f32 %v592, %v604
      %v607 = vmul.f32 %v605, 1.442695
      %v608 = vpow.pop %v607
      %v609 = vmul.f32 %v606, 1.442695
      %v610 = vpow.pop %v609
      %v611 = vsel %vm590, %v608, 0.0
      %v612 = vsel %vm590, %v610, 0.0
      %v613 = vrot.slane %v611, 4
      %v614 = vadd.f32 %v611, %v613
      %v615 = vrot.slane %v614, 2
      %v616 = vadd.f32 %v614, %v615
      %v617 = vrot.slane %v616, 1
      %v618 = vadd.f32 %v616, %v617
      %v619 = vrot.slane %v612, 4
      %v620 = vadd.f32 %v612, %v619
      %v621 = vrot.slane %v620, 2
      %v622 = vadd.f32 %v620, %v621
      %v623 = vrot.slane %v622, 1
      %v624 = vadd.f32 %v622, %v623
      %v625 = vrcp.pop %v618
      %v626 = vrcp.pop %v624
      %v627 = vmul.f32 %v611, %v625
      %v628 = vmul.f32 %v612, %v626
      %v629 = vld [vmem:[%s484] sm:$0xff]
      %v630 = vunpack.c.l.bf16 %v629
      %v631 = vunpack.c.h.bf16 %v629
      %v632 = vlaneseq
      %v633 = vshrl.u32 %v632, 7
      %v634 = vsub.s32 1, %v633
      %v635 = vrot.slane %v532, %v634
      %v636 = vlaneseq
      %v637 = vshrl.u32 %v636, 7
      %v638 = vsub.s32 3, %v637
      %v639 = vrot.slane %v532, %v638
      %v642 = vlaneseq
      %v643 = vshrl.u32 %v642, 7
      %v644 = vsub.s32 1, %v643
      %v645 = vrot.slane %v635, %v644
      %v646 = vlaneseq
      %v647 = vshrl.u32 %v646, 7
      %v648 = vsub.s32 1, %v647
      %v649 = vrot.slane %v639, %v648
      %v650 = vsub.f32 %v630, %v645
      %v651 = vsub.f32 %v631, %v649
      %v652 = vld [vmem:[%s490] sm:$0xff]
      %v653 = vunpack.c.l.bf16 %v652
      %v654 = vunpack.c.h.bf16 %v652
      %v655 = vlaneseq
      %v656 = vshrl.u32 %v655, 7
      %v657 = vsub.s32 1, %v656
      %v658 = vrot.slane %v533, %v657
      %v659 = vlaneseq
      %v660 = vshrl.u32 %v659, 7
      %v661 = vsub.s32 3, %v660
      %v662 = vrot.slane %v533, %v661
      %v665 = vlaneseq
      %v666 = vshrl.u32 %v665, 7
      %v667 = vsub.s32 1, %v666
      %v668 = vrot.slane %v658, %v667
      %v669 = vlaneseq
      %v670 = vshrl.u32 %v669, 7
      %v671 = vsub.s32 1, %v670
      %v672 = vrot.slane %v662, %v671
      %v673 = vsub.f32 %v653, %v668
      %v674 = vsub.f32 %v654, %v672
      %v675 = vmul.f32 %v673, %v650
      %v676 = vmul.f32 %v674, %v651
      %v677 = vmul.f32 %v675, 0.5
      %v678 = vmul.f32 %v676, 0.5
      %v679 = vsel %vm590, %v677, -inf
      %v680 = vsel %vm590, %v678, -inf
      %v681 = vrot.slane %v679, 4
      %v682 = vmax.f32 %v679, %v681
      %v683 = vrot.slane %v682, 2
      %v684 = vmax.f32 %v682, %v683
      %v685 = vrot.slane %v684, 1
      %v686 = vmax.f32 %v684, %v685
      %v687 = vrot.slane %v680, 4
      %v688 = vmax.f32 %v680, %v687
      %v689 = vrot.slane %v688, 2
      %v690 = vmax.f32 %v688, %v689
      %v691 = vrot.slane %v690, 1
      %v692 = vmax.f32 %v690, %v691
      %v693 = vsub.f32 %v679, %v686
      %v694 = vsub.f32 %v680, %v692
      %v695 = vmul.f32 %v693, 1.442695
      %v696 = vpow.pop %v695
      %v697 = vmul.f32 %v694, 1.442695
      %v698 = vpow.pop %v697
      %v699 = vsel %vm590, %v696, 0.0
      %v700 = vsel %vm590, %v698, 0.0
      %v701 = vrot.slane %v699, 4
      %v702 = vadd.f32 %v699, %v701
      %v703 = vrot.slane %v702, 2
      %v704 = vadd.f32 %v702, %v703
      %v705 = vrot.slane %v704, 1
      %v706 = vadd.f32 %v704, %v705
      %v707 = vrot.slane %v700, 4
      %v708 = vadd.f32 %v700, %v707
      %v709 = vrot.slane %v708, 2
      %v710 = vadd.f32 %v708, %v709
      %v711 = vrot.slane %v710, 1
      %v712 = vadd.f32 %v710, %v711
      %v713 = vrcp.pop %v706
      %v714 = vrcp.pop %v712
      %v715 = vmul.f32 %v699, %v713
      %v716 = vmul.f32 %v700, %v714
      %v717 = vld [vmem:[%s500] sm:$0xff]
      %v718 = vunpack.c.l.bf16 %v717
      %v719 = vunpack.c.h.bf16 %v717
      %v720 = vmul.f32 %v718, %v627
      %v721 = vmul.f32 %v719, %v628
      %v722 = vmul.f32 %v720, %v715
      %v723 = vmul.f32 %v721, %v716
      %v724 = vld [vmem:[%s7] sm:$0xf]
      %v725 = vld [vmem:[%s8] sm:$0xf]
      %727 = vset.pattern.permute.xlu0 0
      %728 = vperm.xlu0 %727, %v725
      %v729 = vpop.permute.xlu0 %728
      %vm731 = vcmask 64512
      %v733 = vsel %vm731, %v724, 0
      %735 = vmatprep.subr.mxu0 0.0
      %736 = vmatpush1.msra.mxu0 0.0
      %737 = vmatprep.subr.mxu0 0.0
      %738 = vmatpush1.msra.mxu0 0.0
      %739 = vmatprep.subr.mxu0 0.0
      %740 = vmatpush1.msra.mxu0 0.0
      %741 = vmatprep.subr.mxu0 0.0
      %742 = vmatpush1.msra.mxu0 0.0
      %743 = vmatprep.subr.mxu0 0.0
      %744 = vmatpush1.msra.mxu0 0.0
      %745 = vmatprep.subr.mxu0 0.0
      %746 = vmatpush1.msra.mxu0 0.0
      %747 = vmatprep.subr.mxu0 0.0
      %748 = vmatpush1.msra.mxu0 0.0
      %749 = vmatprep.subr.mxu0 0.0
      %750 = vmatpush1.msra.mxu0 0.0
      %751 = vmatprep.subr.mxu0 0.0
      %752 = vmatpush1.msra.mxu0 0.0
      %753 = vmatprep.subr.mxu0 0.0
      %754 = vmatpush1.msra.mxu0 0.0
      %755 = vmatprep.subr.mxu0 0.0
      %756 = vmatpush1.msra.mxu0 0.0
      %757 = vmatprep.subr.mxu0 0.0
      %758 = vmatpush1.msra.mxu0 0.0
      %759 = vmatprep.subr.mxu0 0.0
      %760 = vmatpush1.msra.mxu0 0.0
      %761 = vmatprep.subr.mxu0 0.0
      %762 = vmatpush1.msra.mxu0 0.0
      %763 = vmatprep.subr.mxu0 0.0
      %764 = vmatpush1.msra.mxu0 0.0
      %765 = vmatprep.subr.mxu0 %v723
      %766 = vmatpush1.msra.mxu0 %v722
      %767 = vmatprep.subr.mxu0 0.0
      %768 = vmatpush2.msra.mxu0 0.0
      %769 = vmatprep.subr.mxu0 0.0
      %770 = vmatpush2.msra.mxu0 0.0
      %771 = vmatprep.subr.mxu0 0.0
      %772 = vmatpush2.msra.mxu0 0.0
      %773 = vmatprep.subr.mxu0 0.0
      %774 = vmatpush2.msra.mxu0 0.0
      %775 = vmatprep.subr.mxu0 0.0
      %776 = vmatpush2.msra.mxu0 0.0
      %777 = vmatprep.subr.mxu0 0.0
      %778 = vmatpush2.msra.mxu0 0.0
      %779 = vmatprep.subr.mxu0 0.0
      %780 = vmatpush2.msra.mxu0 0.0
      %781 = vmatprep.subr.mxu0 0.0
      %782 = vmatpush2.msra.mxu0 0.0
      %783 = vmatprep.subr.mxu0 0.0
      %784 = vmatpush2.msra.mxu0 0.0
      %785 = vmatprep.subr.mxu0 0.0
      %786 = vmatpush2.msra.mxu0 0.0
      %787 = vmatprep.subr.mxu0 0.0
      %788 = vmatpush2.msra.mxu0 0.0
      %789 = vmatprep.subr.mxu0 0.0
      %790 = vmatpush2.msra.mxu0 0.0
      %791 = vmatprep.subr.mxu0 0.0
      %792 = vmatpush2.msra.mxu0 0.0
      %793 = vmatprep.subr.mxu0 0.0
      %794 = vmatpush2.msra.mxu0 0.0
      %795 = vmatprep.subr.mxu0 0.0
      %796 = vmatpush2.msra.mxu0 0.0
      %797 = vmatprep.subr.mxu0 0.0
      %798 = vmatpush2.msra.mxu0 0.0
      %799 = vmatprep.mubr.f32.mxu0 0.0
      %800 = vmatmul.mubr.f32.gmra.mxu0 %v733
      %v801 = vpop.f32.mrf.mxu0
      %v802 = vadd.f32 %v729, %v801
      %v803 = vpop.f32.mrf.mxu0
      %v804 = vadd.f32 %v729, %v803
      %805 = vdwg.mxu0
      %v808 = vcombine.low %v802, %v804
      %810 = vst [vmem:[%s530] sm:$0xff] %v808
      %s811 = smul.u32 2, %s24
      %p812 = scmp.lt.s32.totalorder %s25, 1
      %s813 = scalar_select %p812, %s25, 1
      %p814 = scmp.lt.s32.totalorder %s811, 1
      %s815 = scalar_select %p814, %s811, 1
      %s816 = smul.addr %s813, 2
      %s817 = sadd.s32 %s815, %s816
      %s818 = smul.addr %s817, 4
      %s819 = scalar_lea.vmem %s9, %s818
      // Predicated region
      $region57: #{eda_forward.3} parent=55 // pred_check
        %p820 = pneg %p282
      $region58: #{eda_forward.3} parent=55 // pred_check_branch
        %822 = sbr.rel (%p820) target = $region60
      $region59: #{eda_forward.3} parent=55 // pred_region
        %s823 = smul.u32 2, %s24
      $region60: #{eda_forward.3} parent=55 // pred_fallthru
        _
    $region56: #{eda_forward.3} parent=5 // pred_fallthru
      _
    %p824 = scmp.le.s32.totalorder 2, %s15
    // Predicated region
    $region61: #{eda_forward.3} parent=5 // pred_check
      %p825 = pneg %p824
    $region62: #{eda_forward.3} parent=5 // pred_check_branch
      %827 = sbr.rel (%p825) target = $region64
    $region63: #{eda_forward.3} parent=5 // pred_region
      %s828 = ssub.s32 %s15, 2
      // Predicated region
      $region65: #{eda_forward.3} parent=63 // pred_check
        %p829 = pneg %p288
      $region66: #{eda_forward.3} parent=63 // pred_check_branch
        %831 = sbr.rel (%p829) target = $region68
      $region67: #{eda_forward.3} parent=63 // pred_region
        %s832 = smul.u32 2, %s26
        %p833 = scmp.lt.s32.totalorder %s27, 1
        %s834 = scalar_select %p833, %s27, 1
        %p835 = scmp.lt.s32.totalorder %s832, 1
        %s836 = scalar_select %p835, %s832, 1
        %s837 = smul.addr %s834, 2
        %s838 = sadd.s32 %s836, %s837
        %s839 = smul.addr %s838, 4
        %s840 = scalar_lea.vmem %s9, %s839
      $region68: #{eda_forward.3} parent=63 // pred_fallthru
        _
    $region64: #{eda_forward.3} parent=5 // pred_fallthru
      _
  $region6: #{eda_forward.3} parent=0 // loop_footer
    %s19 = sadd.s32 1, %s15
  $region7: #{eda_forward.3} parent=0 // loop_footer_branch
    %14 = sbr.rel target = $region3
  $region8: #{eda_forward.3} parent=0 // loop_exit
    _

// kernel: eda_forward.2
$region0: #{eda_forward.2}
  #allocation0 [shape = 'u32[]', space=smem, size = 0x4, offset = 0x4, fixed_abs, tag = 'smem constant byte address 0x4 - core index']
  #allocation1 [shape = 'u32[144,128]{1,0:T(1,128)}', space=vmem, size = 0x12000, scoped, tag = 'internal scratch']
  %s0 = inlined_call_operand.vmem [shape: f32[2,4,256], index: 0, kind: input, shape index: {}]
  %s1 = inlined_call_operand.vmem [shape: f32[32,4], index: 1, kind: input, shape index: {}]
  %s2 = inlined_call_operand.vmem [shape: f32[32,1], index: 2, kind: input, shape index: {}]
  %s3 = inlined_call_operand.vmem [shape: bf16[2,8,256], index: 3, kind: output, shape index: {0}]
  %s4 = inlined_call_operand.vmem [shape: bf16[8,256], index: 4, kind: output, shape index: {1}]
  %s5 = inlined_call_operand.vmem [shape: bf16[8,256], index: 5, kind: output, shape index: {2}]
  %s6 = inlined_call_operand.vmem [shape: f32[2,2,256], index: 6, kind: output, shape index: {3}]
  %7 = xla_tuple %s3, %s4, %s5, %s6
  %s8 = sld [smem:[#allocation0]]
  $region73: #{eda_forward.2} parent=0
    _
  %s10 = ssub.s32 1, %s8
  %s11 = scalar_select 0, %s10, %s8
  loop: start=0, step=1, limit=4
  $region2: #{eda_forward.2} parent=0 // loop_pre_header
    _
  $region3: #{eda_forward.2} parent=0 // loop_header
    %s13 = sphi 0, %s17
    %p14 = scmp.ge.s32.totalorder %s13, 4
    %s20 = sphi 0, %s32
    %s21 = sphi 0, %s28
    %s22 = sphi 0, %s20
    %s23 = sphi 0, %s21
    %s24 = sphi 0, %s22
    %s25 = sphi 0, %s23
    %s37 = sphi 0, %s39
    %s40 = sphi 0, %s37
    %s41 = sphi 0, %s40
    %s57 = sphi 0, %s41
    %s61 = sphi 0, %s61
    %s63 = sphi 0, %s61
    %s64 = sphi 0, %s63
    %s78 = sphi 0, %s64
    %s82 = sphi 0, %s82
    %s84 = sphi 0, %s82
    %s85 = sphi 0, %s84
    %s99 = sphi 0, %s85
    %s107 = sphi 0, %s109
    %s110 = sphi 0, %s107
    %s111 = sphi 0, %s110
    %s127 = sphi 0, %s111
    %s133 = sphi 0, %s135
    %s136 = sphi 0, %s133
    %s137 = sphi 0, %s136
    %s153 = sphi 0, %s137
    %s159 = sphi 0, %s161
    %s162 = sphi 0, %s159
    %s163 = sphi 0, %s162
    %s179 = sphi 0, %s163
    %s187 = sphi 0, %s189
    %s190 = sphi 0, %s187
    %s191 = sphi 0, %s190
    %s207 = sphi 0, %s191
  $region4: #{eda_forward.2} parent=0 // loop_header_branch
    %16 = sbr.rel (%p14) target = $region8
  $region5: #{eda_forward.2} parent=0 // loop_body
    %s18 = ssub.s32 %s13, 1
    %s19 = ssub.s32 %s13, 2
    %s26 = sadd.s32 1, %s21
    %p27 = scmp.ge.s32.totalorder %s26, 2
    %s28 = scalar_select %p27, 0, %s26
    %s29 = sadd.s32 1, %s20
    %s30 = scalar_select %p27, %s29, %s20
    %p31 = scmp.ge.s32.totalorder %s30, 1
    %s32 = scalar_select %p31, 0, %s30
    %s33 = ssub.s32 %s21, %s28
    %s34 = ssub.s32 %s20, %s32
    %s35 = sor.u32 %s33, %s34
    %p36 = scmp.eq.s32.totalorder %s35, 0
    %s38 = sadd.s32 %s37, 1
    %s39 = scalar_select %p36, %s37, %s38
    %p42 = pneg %p36
    %p43 = scmp.eq.s32.totalorder %s13, 1
    %p44 = por %p42, %p43
    %p45 = scmp.ne.s32.totalorder %s37, %s40
    %p46 = scmp.eq.s32.totalorder %s13, 0
    %p47 = por %p45, %p46
    %p48 = scmp.ne.s32.totalorder %s37, %s40
    %p49 = scmp.eq.s32.totalorder %s18, 1
    %p50 = por %p48, %p49
    %p51 = scmp.ne.s32.totalorder %s40, %s41
    %p52 = scmp.eq.s32.totalorder %s18, 0
    %p53 = por %p51, %p52
    %p54 = scmp.ne.s32.totalorder %s40, %s41
    %p55 = scmp.eq.s32.totalorder %s19, 1
    %p56 = por %p54, %p55
    %p58 = scmp.ne.s32.totalorder %s41, %s57
    %p59 = scmp.eq.s32.totalorder %s19, 0
    %p60 = por %p58, %p59
    %s62 = sadd.s32 %s61, 1
    %p65 = scmp.eq.s32.totalorder %s13, 1
    %p66 = scmp.ne.s32.totalorder %s61, %s63
    %p67 = scmp.eq.s32.totalorder %s13, 0
    %p68 = por %p66, %p67
    %p69 = scmp.ne.s32.totalorder %s61, %s63
    %p70 = scmp.eq.s32.totalorder %s18, 1
    %p71 = por %p69, %p70
    %p72 = scmp.ne.s32.totalorder %s63, %s64
    %p73 = scmp.eq.s32.totalorder %s18, 0
    %p74 = por %p72, %p73
    %p75 = scmp.ne.s32.totalorder %s63, %s64
    %p76 = scmp.eq.s32.totalorder %s19, 1
    %p77 = por %p75, %p76
    %p79 = scmp.ne.s32.totalorder %s64, %s78
    %p80 = scmp.eq.s32.totalorder %s19, 0
    %p81 = por %p79, %p80
    %s83 = sadd.s32 %s82, 1
    %p86 = scmp.eq.s32.totalorder %s13, 1
    %p87 = scmp.ne.s32.totalorder %s82, %s84
    %p88 = scmp.eq.s32.totalorder %s13, 0
    %p89 = por %p87, %p88
    %p90 = scmp.ne.s32.totalorder %s82, %s84
    %p91 = scmp.eq.s32.totalorder %s18, 1
    %p92 = por %p90, %p91
    %p93 = scmp.ne.s32.totalorder %s84, %s85
    %p94 = scmp.eq.s32.totalorder %s18, 0
    %p95 = por %p93, %p94
    %p96 = scmp.ne.s32.totalorder %s84, %s85
    %p97 = scmp.eq.s32.totalorder %s19, 1
    %p98 = por %p96, %p97
    %p100 = scmp.ne.s32.totalorder %s85, %s99
    %p101 = scmp.eq.s32.totalorder %s19, 0
    %p102 = por %p100, %p101
    %s103 = ssub.s32 %s21, %s28
    %s104 = ssub.s32 %s20, %s32
    %s105 = sor.u32 %s103, %s104
    %p106 = scmp.eq.s32.totalorder %s105, 0
    %s108 = sadd.s32 %s107, 1
    %s109 = scalar_select %p106, %s107, %s108
    %p112 = pneg %p106
    %p113 = scmp.eq.s32.totalorder %s13, 1
    %p114 = por %p112, %p113
    %p115 = scmp.ne.s32.totalorder %s107, %s110
    %p116 = scmp.eq.s32.totalorder %s13, 0
    %p117 = por %p115, %p116
    %p118 = scmp.ne.s32.totalorder %s107, %s110
    %p119 = scmp.eq.s32.totalorder %s18, 1
    %p120 = por %p118, %p119
    %p121 = scmp.ne.s32.totalorder %s110, %s111
    %p122 = scmp.eq.s32.totalorder %s18, 0
    %p123 = por %p121, %p122
    %p124 = scmp.ne.s32.totalorder %s110, %s111
    %p125 = scmp.eq.s32.totalorder %s19, 1
    %p126 = por %p124, %p125
    %p128 = scmp.ne.s32.totalorder %s111, %s127
    %p129 = scmp.eq.s32.totalorder %s19, 0
    %p130 = por %p128, %p129
    %s131 = ssub.s32 %s20, %s32
    %p132 = scmp.eq.s32.totalorder %s131, 0
    %s134 = sadd.s32 %s133, 1
    %s135 = scalar_select %p132, %s133, %s134
    %p138 = pneg %p132
    %p139 = scmp.eq.s32.totalorder %s13, 1
    %p140 = por %p138, %p139
    %p141 = scmp.ne.s32.totalorder %s133, %s136
    %p142 = scmp.eq.s32.totalorder %s13, 0
    %p143 = por %p141, %p142
    %p144 = scmp.ne.s32.totalorder %s133, %s136
    %p145 = scmp.eq.s32.totalorder %s18, 1
    %p146 = por %p144, %p145
    %p147 = scmp.ne.s32.totalorder %s136, %s137
    %p148 = scmp.eq.s32.totalorder %s18, 0
    %p149 = por %p147, %p148
    %p150 = scmp.ne.s32.totalorder %s136, %s137
    %p151 = scmp.eq.s32.totalorder %s19, 1
    %p152 = por %p150, %p151
    %p154 = scmp.ne.s32.totalorder %s137, %s153
    %p155 = scmp.eq.s32.totalorder %s19, 0
    %p156 = por %p154, %p155
    %s157 = ssub.s32 %s20, %s32
    %p158 = scmp.eq.s32.totalorder %s157, 0
    %s160 = sadd.s32 %s159, 1
    %s161 = scalar_select %p158, %s159, %s160
    %p164 = pneg %p158
    %p165 = scmp.eq.s32.totalorder %s13, 1
    %p166 = por %p164, %p165
    %p167 = scmp.ne.s32.totalorder %s159, %s162
    %p168 = scmp.eq.s32.totalorder %s13, 0
    %p169 = por %p167, %p168
    %p170 = scmp.ne.s32.totalorder %s159, %s162
    %p171 = scmp.eq.s32.totalorder %s18, 1
    %p172 = por %p170, %p171
    %p173 = scmp.ne.s32.totalorder %s162, %s163
    %p174 = scmp.eq.s32.totalorder %s18, 0
    %p175 = por %p173, %p174
    %p176 = scmp.ne.s32.totalorder %s162, %s163
    %p177 = scmp.eq.s32.totalorder %s19, 1
    %p178 = por %p176, %p177
    %p180 = scmp.ne.s32.totalorder %s163, %s179
    %p181 = scmp.eq.s32.totalorder %s19, 0
    %p182 = por %p180, %p181
    %s183 = ssub.s32 %s21, %s28
    %s184 = ssub.s32 %s20, %s32
    %s185 = sor.u32 %s183, %s184
    %p186 = scmp.eq.s32.totalorder %s185, 0
    %s188 = sadd.s32 %s187, 1
    %s189 = scalar_select %p186, %s187, %s188
    %p192 = pneg %p186
    %p193 = scmp.eq.s32.totalorder %s13, 1
    %p194 = por %p192, %p193
    %p195 = scmp.ne.s32.totalorder %s187, %s190
    %p196 = scmp.eq.s32.totalorder %s13, 0
    %p197 = por %p195, %p196
    %p198 = scmp.ne.s32.totalorder %s187, %s190
    %p199 = scmp.eq.s32.totalorder %s18, 1
    %p200 = por %p198, %p199
    %p201 = scmp.ne.s32.totalorder %s190, %s191
    %p202 = scmp.eq.s32.totalorder %s18, 0
    %p203 = por %p201, %p202
    %p204 = scmp.ne.s32.totalorder %s190, %s191
    %p205 = scmp.eq.s32.totalorder %s19, 1
    %p206 = por %p204, %p205
    %p208 = scmp.ne.s32.totalorder %s191, %s207
    %p209 = scmp.eq.s32.totalorder %s19, 0
    %p210 = por %p208, %p209
    %p211 = scmp.le.s32.totalorder 1, %s13
    %p212 = scmp.lt.s32.totalorder %s13, 3
    %p213 = pnand %p211, %p212
    %p214 = pneg %p213
    // Predicated region
    $region9: #{eda_forward.2} parent=5 // pred_check
      _
    $region10: #{eda_forward.2} parent=5 // pred_check_branch
      %216 = sbr.rel (%p213) target = $region12
    $region11: #{eda_forward.2} parent=5 // pred_region
      %s217 = ssub.s32 %s13, 1
      // Predicated region
      $region13: #{eda_forward.2} parent=11 // pred_check
        %p218 = pneg %p74
      $region14: #{eda_forward.2} parent=11 // pred_check_branch
        %220 = sbr.rel (%p218) target = $region16
      $region15: #{eda_forward.2} parent=11 // pred_region
        _
      $region16: #{eda_forward.2} parent=11 // pred_fallthru
        _
      // Predicated region
      $region17: #{eda_forward.2} parent=11 // pred_check
        %p221 = pneg %p95
      $region18: #{eda_forward.2} parent=11 // pred_check_branch
        %223 = sbr.rel (%p221) target = $region20
      $region19: #{eda_forward.2} parent=11 // pred_region
        _
      $region20: #{eda_forward.2} parent=11 // pred_fallthru
        _
    $region12: #{eda_forward.2} parent=5 // pred_fallthru
      _
    %p224 = scmp.lt.s32.totalorder %s13, 2
    // Predicated region
    $region21: #{eda_forward.2} parent=5 // pred_check
      %p225 = pneg %p224
    $region22: #{eda_forward.2} parent=5 // pred_check_branch
      %227 = sbr.rel (%p225) target = $region24
    $region23: #{eda_forward.2} parent=5 // pred_region
      // Predicated region
      $region25: #{eda_forward.2} parent=23 // pred_check
        %p228 = pneg %p47
      $region26: #{eda_forward.2} parent=23 // pred_check_branch
        %230 = sbr.rel (%p228) target = $region28
      $region27: #{eda_forward.2} parent=23 // pred_region
        %s231 = smul.u32 2, %s20
        %p232 = scmp.lt.s32.totalorder %s21, 1
        %s233 = scalar_select %p232, %s21, 1
        %p234 = scmp.lt.s32.totalorder %s231, 1
        %s235 = scalar_select %p234, %s231, 1
        %s236 = smul.addr %s233, 2
        %s237 = sadd.s32 %s235, %s236
        %s238 = smul.addr %s237, 4
        %s239 = scalar_lea.vmem %s0, %s238
        %s240 = smul.u32 2, %s20
      $region28: #{eda_forward.2} parent=23 // pred_fallthru
        _
    $region24: #{eda_forward.2} parent=5 // pred_fallthru
      _
    %p241 = scmp.le.s32.totalorder 1, %s13
    %p242 = scmp.lt.s32.totalorder %s13, 3
    %p243 = pnand %p241, %p242
    %p244 = pneg %p243
    // Predicated region
    $region29: #{eda_forward.2} parent=5 // pred_check
      _
    $region30: #{eda_forward.2} parent=5 // pred_check_branch
      %246 = sbr.rel (%p243) target = $region32
    $region31: #{eda_forward.2} parent=5 // pred_region
      %s247 = ssub.s32 %s13, 1
      %s248 = smul.u32 2, %s22
      %p249 = scmp.lt.s32.totalorder %s23, 1
      %s250 = scalar_select %p249, %s23, 1
      %p251 = scmp.lt.s32.totalorder %s248, 1
      %s252 = scalar_select %p251, %s248, 1
      %s253 = smul.addr %s250, 2
      %s254 = sadd.s32 %s252, %s253
      %s255 = smul.addr %s254, 4
      %s256 = scalar_lea.vmem %s0, %s255
      %p257 = pneg %p53
      %p258 = pneg %p50
      %p259 = pneg %p74
      %p260 = pneg %p71
      %p261 = pneg %p95
      %p262 = pneg %p92
      %p263 = pneg %p123
      %p264 = pneg %p120
      %s265 = smul.u32 2, %s22
      %p266 = scmp.lt.s32.totalorder %s23, 1
      %s267 = scalar_select %p266, %s23, 1
      %p268 = scmp.lt.s32.totalorder %s265, 1
      %s269 = scalar_select %p268, %s265, 1
      %s270 = smul.addr %s267, 2
      %s271 = sadd.s32 %s269, %s270
      %s272 = smul.addr %s271, 4
      %s273 = scalar_lea.vmem %s3, %s272
      %p274 = pneg %p149
      %p275 = pneg %p146
      %s276 = smul.u32 2, %s22
      %p277 = scmp.lt.s32.totalorder %s276, 1
      %s278 = scalar_select %p277, %s276, 1
      %s279 = smul.addr %s278, 4
      %s280 = scalar_lea.vmem %s4, %s279
      %p281 = pneg %p175
      %p282 = pneg %p172
      %s283 = smul.u32 2, %s22
      %p284 = scmp.lt.s32.totalorder %s283, 1
      %s285 = scalar_select %p284, %s283, 1
      %s286 = smul.addr %s285, 4
      %s287 = scalar_lea.vmem %s5, %s286
      %p288 = pneg %p203
      %p289 = pneg %p200
      %s290 = smul.u32 2, %s22
      %p291 = scmp.lt.s32.totalorder %s23, 1
      %s292 = scalar_select %p291, %s23, 1
      %p293 = scmp.lt.s32.totalorder %s290, 1
      %s294 = scalar_select %p293, %s290, 1
      %s295 = smul.addr %s292, 2
      %s296 = sadd.s32 %s294, %s295
      %s297 = smul.addr %s296, 2
      %s298 = scalar_lea.vmem %s6, %s297
      %s299 = smul.u32 2, %s22
      %p300 = scmp.lt.s32.totalorder %s23, 1
      %s301 = scalar_select %p300, %s23, 1
      %p302 = scmp.lt.s32.totalorder %s299, 1
      %s303 = scalar_select %p302, %s299, 1
      %s304 = smul.addr %s301, 2
      %s305 = sadd.s32 %s303, %s304
      %s306 = smul.addr %s305, 4
      %s307 = scalar_lea.vmem %s0, %s306
      %s308 = smul.u32 2, %s22
      %s309 = smul.u32 2, %s22
      %p310 = scmp.lt.s32.totalorder %s23, 1
      %s311 = scalar_select %p310, %s23, 1
      %p312 = scmp.lt.s32.totalorder %s309, 1
      %s313 = scalar_select %p312, %s309, 1
      %s314 = smul.addr %s311, 2
      %s315 = sadd.s32 %s313, %s314
      %s316 = smul.addr %s315, 4
      %s317 = scalar_lea.vmem %s3, %s316
      %s318 = smul.u32 2, %s22
      %s319 = smul.u32 2, %s22
      %p320 = scmp.lt.s32.totalorder %s319, 1
      %s321 = scalar_select %p320, %s319, 1
      %s322 = smul.addr %s321, 4
      %s323 = scalar_lea.vmem %s4, %s322
      %s324 = smul.u32 2, %s22
      %s325 = smul.u32 2, %s22
      %p326 = scmp.lt.s32.totalorder %s325, 1
      %s327 = scalar_select %p326, %s325, 1
      %s328 = smul.addr %s327, 4
      %s329 = scalar_lea.vmem %s5, %s328
      %s330 = smul.u32 2, %s22
      %s331 = smul.u32 2, %s22
      %p332 = scmp.lt.s32.totalorder %s23, 1
      %s333 = scalar_select %p332, %s23, 1
      %p334 = scmp.lt.s32.totalorder %s331, 1
      %s335 = scalar_select %p334, %s331, 1
      %s336 = smul.addr %s333, 2
      %s337 = sadd.s32 %s335, %s336
      %s338 = smul.addr %s337, 2
      %s339 = scalar_lea.vmem %s6, %s338
      %s340 = smul.u32 2, %s22
      %v341 = vld [vmem:[%s1] sm:$0xff]
      %v342 = vld [vmem:[%s1 + $0x8] sm:$0xff]
      %v343 = vld [vmem:[%s1 + $0x10] sm:$0xff]
      %v344 = vld [vmem:[%s1 + $0x18] sm:$0xff]
      %v345 = vld [vmem:[%s307] sm:$0xff]
      %v346 = vld [vmem:[%s2] sm:$0xff]
      %v347 = vld [vmem:[%s2 + $0x8] sm:$0xff]
      %v348 = vld [vmem:[%s2 + $0x10] sm:$0xff]
      %v349 = vld [vmem:[%s2 + $0x18] sm:$0xff]
      %351 = vset.pattern.permute.xlu0 0
      %352 = vperm.xlu0 %351, %v346
      %v353 = vpop.permute.xlu0 %352
      %356 = vset.pattern.permute.xlu0 0
      %357 = vperm.xlu0 %356, %v347
      %v358 = vpop.permute.xlu0 %357
      %361 = vset.pattern.permute.xlu0 0
      %362 = vperm.xlu0 %361, %v348
      %v363 = vpop.permute.xlu0 %362
      %366 = vset.pattern.permute.xlu0 0
      %367 = vperm.xlu0 %366, %v349
      %v368 = vpop.permute.xlu0 %367
      %v371 = vcombine.high %v345, %v345
      %vm372 = vcmask 31744
      %v374 = vsel %vm372, %v341, 0
      %v377 = vsel %vm372, %v342, 0
      %v380 = vsel %vm372, %v343, 0
      %v383 = vsel %vm372, %v344, 0
      %vm385 = vcmask 1043456
      %v386 = vsel %vm385, %v345, 0
      %v388 = vsel %vm385, %v371, 0
      %390 = vmatprep.subr.mxu0 0.0
      %391 = vmatpush1.msra.mxu0 0.0
      %392 = vmatprep.subr.mxu0 0.0
      %393 = vmatpush1.msra.mxu0 0.0
      %394 = vmatprep.subr.mxu0 0.0
      %395 = vmatpush1.msra.mxu0 0.0
      %396 = vmatprep.subr.mxu0 0.0
      %397 = vmatpush1.msra.mxu0 0.0
      %398 = vmatprep.subr.mxu0 0.0
      %399 = vmatpush1.msra.mxu0 0.0
      %400 = vmatprep.subr.mxu0 0.0
      %401 = vmatpush1.msra.mxu0 0.0
      %402 = vmatprep.subr.mxu0 0.0
      %403 = vmatpush1.msra.mxu0 0.0
      %404 = vmatprep.subr.mxu0 0.0
      %405 = vmatpush1.msra.mxu0 0.0
      %406 = vmatprep.subr.mxu0 0.0
      %407 = vmatpush1.msra.mxu0 0.0
      %408 = vmatprep.subr.mxu0 0.0
      %409 = vmatpush1.msra.mxu0 0.0
      %410 = vmatprep.subr.mxu0 0.0
      %411 = vmatpush1.msra.mxu0 0.0
      %412 = vmatprep.subr.mxu0 0.0
      %413 = vmatpush1.msra.mxu0 0.0
      %414 = vmatprep.subr.mxu0 0.0
      %415 = vmatpush1.msra.mxu0 0.0
      %416 = vmatprep.subr.mxu0 0.0
      %417 = vmatpush1.msra.mxu0 0.0
      %418 = vmatprep.subr.mxu0 0.0
      %419 = vmatpush1.msra.mxu0 0.0
      %420 = vmatprep.subr.mxu0 %v388
      %421 = vmatpush1.msra.mxu0 %v386
      %422 = vmatprep.subr.mxu0 0.0
      %423 = vmatpush2.msra.mxu0 0.0
      %424 = vmatprep.subr.mxu0 0.0
      %425 = vmatpush2.msra.mxu0 0.0
      %426 = vmatprep.subr.mxu0 0.0
      %427 = vmatpush2.msra.mxu0 0.0
      %428 = vmatprep.subr.mxu0 0.0
      %429 = vmatpush2.msra.mxu0 0.0
      %430 = vmatprep.subr.mxu0 0.0
      %431 = vmatpush2.msra.mxu0 0.0
      %432 = vmatprep.subr.mxu0 0.0
      %433 = vmatpush2.msra.mxu0 0.0
      %434 = vmatprep.subr.mxu0 0.0
      %435 = vmatpush2.msra.mxu0 0.0
      %436 = vmatprep.subr.mxu0 0.0
      %437 = vmatpush2.msra.mxu0 0.0
      %438 = vmatprep.subr.mxu0 0.0
      %439 = vmatpush2.msra.mxu0 0.0
      %440 = vmatprep.subr.mxu0 0.0
      %441 = vmatpush2.msra.mxu0 0.0
      %442 = vmatprep.subr.mxu0 0.0
      %443 = vmatpush2.msra.mxu0 0.0
      %444 = vmatprep.subr.mxu0 0.0
      %445 = vmatpush2.msra.mxu0 0.0
      %446 = vmatprep.subr.mxu0 0.0
      %447 = vmatpush2.msra.mxu0 0.0
      %448 = vmatprep.subr.mxu0 0.0
      %449 = vmatpush2.msra.mxu0 0.0
      %450 = vmatprep.subr.mxu0 0.0
      %451 = vmatpush2.msra.mxu0 0.0
      %452 = vmatprep.subr.mxu0 0.0
      %453 = vmatpush2.msra.mxu0 0.0
      %454 = vmatprep.mubr.f32.mxu0 0.0
      %455 = vmatmul.mubr.f32.gmra.mxu0 %v374
      %v456 = vpop.f32.mrf.mxu0
      %v457 = vadd.f32 %v353, %v456
      %v458 = vpop.f32.mrf.mxu0
      %v459 = vadd.f32 %v353, %v458
      %460 = vmatprep.mubr.f32.mxu0 0.0
      %461 = vmatmul.mubr.f32.gmra.mxu0 %v377
      %v462 = vpop.f32.mrf.mxu0
      %v463 = vadd.f32 %v358, %v462
      %v464 = vpop.f32.mrf.mxu0
      %v465 = vadd.f32 %v358, %v464
      %466 = vmatprep.mubr.f32.mxu0 0.0
      %467 = vmatmul.mubr.f32.gmra.mxu0 %v380
      %v468 = vpop.f32.mrf.mxu0
      %v469 = vadd.f32 %v363, %v468
      %v470 = vpop.f32.mrf.mxu0
      %v471 = vadd.f32 %v363, %v470
      %472 = vmatprep.mubr.f32.mxu0 0.0
      %473 = vmatmul.mubr.f32.gmra.mxu0 %v383
      %v474 = vpop.f32.mrf.mxu0
      %v475 = vadd.f32 %v368, %v474
      %v476 = vpop.f32.mrf.mxu0
      %v477 = vadd.f32 %v368, %v476
      %478 = vdwg.mxu0
      %v479 = vpack.c.bf16 %v463, %v463
      %v480 = vpack.c.bf16 %v465, %v465
      %v483 = vunpack.c.l.b16 %v479
      %v484 = vunpack.c.l.b16 %v480
      %v485 = vpack.c.b16 %v484, %v483
      %487 = vst [vmem:[%s317] sm:$0xff] %v485
      %v490 = vcombine.low %v475, %v477
      %v492 = vunpack.c.l.s4 1983009808
      %v493 = vunpack.c.0.s8 %v492
      %v494 = vlaneseq
      %v495 = vshrl.u32 %v494, 7
      %v496 = vsub.s32 %v493, %v495
      %v497 = vrot.slane %v490, %v496
      %499 = vst [vmem:[%s339] sm:$0xf] %v497
      %p500 = scmp.eq.s32.totalorder %s23, 1
      // Predicated region
      $region33: #{eda_forward.2} parent=31 // pred_check
        %p501 = pneg %p500
      $region34: #{eda_forward.2} parent=31 // pred_check_branch
        %503 = sbr.rel (%p501) target = $region36
      $region35: #{eda_forward.2} parent=31 // pred_region
        %v504 = vpack.c.bf16 %v457, %v457
        %v505 = vpack.c.bf16 %v459, %v459
        %v508 = vunpack.c.l.b16 %v504
        %v509 = vunpack.c.l.b16 %v505
        %v510 = vpack.c.b16 %v509, %v508
        %512 = vst [vmem:[%s323] sm:$0xff] %v510
        %v513 = vpack.c.bf16 %v469, %v469
        %v514 = vpack.c.bf16 %v471, %v471
        %v517 = vunpack.c.l.b16 %v513
        %v518 = vunpack.c.l.b16 %v514
        %v519 = vpack.c.b16 %v518, %v517
        %521 = vst [vmem:[%s329] sm:$0xff] %v519
      $region36: #{eda_forward.2} parent=31 // pred_fallthru
        _
      %s522 = smul.u32 2, %s22
      %p523 = scmp.lt.s32.totalorder %s23, 1
      %s524 = scalar_select %p523, %s23, 1
      %p525 = scmp.lt.s32.totalorder %s522, 1
      %s526 = scalar_select %p525, %s522, 1
      %s527 = smul.addr %s524, 2
      %s528 = sadd.s32 %s526, %s527
      %s529 = smul.addr %s528, 4
      %s530 = scalar_lea.vmem %s3, %s529
      %s531 = smul.u32 2, %s22
      %p532 = scmp.lt.s32.totalorder %s531, 1
      %s533 = scalar_select %p532, %s531, 1
      %s534 = smul.addr %s533, 4
      %s535 = scalar_lea.vmem %s4, %s534
      %s536 = smul.u32 2, %s22
      %p537 = scmp.lt.s32.totalorder %s536, 1
      %s538 = scalar_select %p537, %s536, 1
      %s539 = smul.addr %s538, 4
      %s540 = scalar_lea.vmem %s5, %s539
      %s541 = smul.u32 2, %s22
      %p542 = scmp.lt.s32.totalorder %s23, 1
      %s543 = scalar_select %p542, %s23, 1
      %p544 = scmp.lt.s32.totalorder %s541, 1
      %s545 = scalar_select %p544, %s541, 1
      %s546 = smul.addr %s543, 2
      %s547 = sadd.s32 %s545, %s546
      %s548 = smul.addr %s547, 2
      %s549 = scalar_lea.vmem %s6, %s548
      // Predicated region
      $region37: #{eda_forward.2} parent=31 // pred_check
        %p550 = pneg %p120
      $region38: #{eda_forward.2} parent=31 // pred_check_branch
        %552 = sbr.rel (%p550) target = $region40
      $region39: #{eda_forward.2} parent=31 // pred_region
        %s553 = smul.u32 2, %s22
      $region40: #{eda_forward.2} parent=31 // pred_fallthru
        _
      // Predicated region
      $region41: #{eda_forward.2} parent=31 // pred_check
        %p554 = pneg %p146
      $region42: #{eda_forward.2} parent=31 // pred_check_branch
        %556 = sbr.rel (%p554) target = $region44
      $region43: #{eda_forward.2} parent=31 // pred_region
        %s557 = smul.u32 2, %s22
      $region44: #{eda_forward.2} parent=31 // pred_fallthru
        _
      // Predicated region
      $region45: #{eda_forward.2} parent=31 // pred_check
        %p558 = pneg %p172
      $region46: #{eda_forward.2} parent=31 // pred_check_branch
        %560 = sbr.rel (%p558) target = $region48
      $region47: #{eda_forward.2} parent=31 // pred_region
        %s561 = smul.u32 2, %s22
      $region48: #{eda_forward.2} parent=31 // pred_fallthru
        _
      // Predicated region
      $region49: #{eda_forward.2} parent=31 // pred_check
        %p562 = pneg %p200
      $region50: #{eda_forward.2} parent=31 // pred_check_branch
        %564 = sbr.rel (%p562) target = $region52
      $region51: #{eda_forward.2} parent=31 // pred_region
        %s565 = smul.u32 2, %s22
      $region52: #{eda_forward.2} parent=31 // pred_fallthru
        _
      // Predicated region
      $region53: #{eda_forward.2} parent=31 // pred_check
        %p566 = pneg %p146
      $region54: #{eda_forward.2} parent=31 // pred_check_branch
        %568 = sbr.rel (%p566) target = $region56
      $region55: #{eda_forward.2} parent=31 // pred_region
        %s569 = smul.u32 2, %s22
        %p570 = scmp.lt.s32.totalorder %s569, 1
        %s571 = scalar_select %p570, %s569, 1
        %s572 = smul.addr %s571, 4
        %s573 = scalar_lea.vmem %s4, %s572
      $region56: #{eda_forward.2} parent=31 // pred_fallthru
        _
      // Predicated region
      $region57: #{eda_forward.2} parent=31 // pred_check
        %p574 = pneg %p172
      $region58: #{eda_forward.2} parent=31 // pred_check_branch
        %576 = sbr.rel (%p574) target = $region60
      $region59: #{eda_forward.2} parent=31 // pred_region
        %s577 = smul.u32 2, %s22
        %p578 = scmp.lt.s32.totalorder %s577, 1
        %s579 = scalar_select %p578, %s577, 1
        %s580 = smul.addr %s579, 4
        %s581 = scalar_lea.vmem %s5, %s580
      $region60: #{eda_forward.2} parent=31 // pred_fallthru
        _
    $region32: #{eda_forward.2} parent=5 // pred_fallthru
      _
    %p582 = scmp.le.s32.totalorder 2, %s13
    // Predicated region
    $region61: #{eda_forward.2} parent=5 // pred_check
      %p583 = pneg %p582
    $region62: #{eda_forward.2} parent=5 // pred_check_branch
      %585 = sbr.rel (%p583) target = $region64
    $region63: #{eda_forward.2} parent=5 // pred_region
      %s586 = ssub.s32 %s13, 2
      // Predicated region
      $region65: #{eda_forward.2} parent=63 // pred_check
        %p587 = pneg %p126
      $region66: #{eda_forward.2} parent=63 // pred_check_branch
        %589 = sbr.rel (%p587) target = $region68
      $region67: #{eda_forward.2} parent=63 // pred_region
        %s590 = smul.u32 2, %s24
        %p591 = scmp.lt.s32.totalorder %s25, 1
        %s592 = scalar_select %p591, %s25, 1
        %p593 = scmp.lt.s32.totalorder %s590, 1
        %s594 = scalar_select %p593, %s590, 1
        %s595 = smul.addr %s592, 2
        %s596 = sadd.s32 %s594, %s595
        %s597 = smul.addr %s596, 4
        %s598 = scalar_lea.vmem %s3, %s597
      $region68: #{eda_forward.2} parent=63 // pred_fallthru
        _
      // Predicated region
      $region69: #{eda_forward.2} parent=63 // pred_check
        %p599 = pneg %p206
      $region70: #{eda_forward.2} parent=63 // pred_check_branch
        %601 = sbr.rel (%p599) target = $region72
      $region71: #{eda_forward.2} parent=63 // pred_region
        %s602 = smul.u32 2, %s24
        %p603 = scmp.lt.s32.totalorder %s25, 1
        %s604 = scalar_select %p603, %s25, 1
        %p605 = scmp.lt.s32.totalorder %s602, 1
        %s606 = scalar_select %p605, %s602, 1
        %s607 = smul.addr %s604, 2
        %s608 = sadd.s32 %s606, %s607
        %s609 = smul.addr %s608, 2
        %s610 = scalar_lea.vmem %s6, %s609
      $region72: #{eda_forward.2} parent=63 // pred_fallthru
        _
    $region64: #{eda_forward.2} parent=5 // pred_fallthru
      _
  $region6: #{eda_forward.2} parent=0 // loop_footer
    %s17 = sadd.s32 1, %s13
  $region7: #{eda_forward.2} parent=0 // loop_footer_branch
    %12 = sbr.rel target = $region3
  $region8: #{eda_forward.2} parent=0 // loop_exit
    _

</llo_original>
